<compile_context>
chip_gen: v6e
topology: v6e:2x2x1
jax: 0.10.0
libtpu: 0.0.40
codegen_flags: <defaults>
</compile_context>

<pallas_src>
import math
from functools import partial

import jax
import jax.numpy as jnp
from jax.experimental import pallas as pl
from jax.experimental.pallas import tpu as pltpu

LN_EPS = 1e-5
# Conservative explicit budget so the kernels also fit v7x (64 MiB physical VMEM).
# On v5e/v6e (128 MiB) this can be raised to 64-96 MiB together with larger tiles.
VMEM_LIMIT_BYTES = 32 * 1024 * 1024


def _pick_tile(n: int, cap: int, multiple: int) -> int:
    """Largest divisor of n that is <= cap and a multiple of `multiple`.

    Falls back to the largest divisor <= cap (ragged token counts such as S=197),
    and finally to n itself.
    """
    best = None
    for d in range(min(n, cap), 0, -1):
        if n % d == 0:
            if best is None:
                best = d
            if d % multiple == 0:
                return d
    return best if best is not None else n


# ---------------------------------------------------------------------------
# Kernel A: fused (residual add) + LayerNorm + fused QKV projection.
# Grid = (row tiles of the flattened (B*S, D) token matrix,
#         column tiles of the 3*D QKV output).
# LayerNorm runs once per row tile (j == 0); its bf16 result is cached in a VMEM
# scratch and reused for every column tile, so the (D, tn) weight block can be kept
# small enough for v7x's VMEM without recomputing the norm.
# ---------------------------------------------------------------------------
def _add_ln_qkv_kernel(*refs, has_residual):
    if has_residual:
        (hid_ref, res_ref, gb_ref, bqkv_ref, wqkv_ref,
         res_out_ref, qkv_ref, normed_ref) = refs
    else:
        (hid_ref, gb_ref, bqkv_ref, wqkv_ref,
         qkv_ref, normed_ref) = refs

    j = pl.program_id(1)

    @pl.when(j == 0)
    def _():
        x = hid_ref[...]                          # f32
        if has_residual:
            x = res_ref[...] + x                  # fused residual add (f32)
            res_out_ref[...] = x                  # residual output (resident block)
        gamma = gb_ref[0:1, :]                    # (1, D)
        beta = gb_ref[1:2, :]                     # (1, D)
        # one-pass LN statistics: var = E[x^2] - mu^2
        mu = jnp.mean(x, axis=-1, keepdims=True)
        ms = jnp.mean(x * x, axis=-1, keepdims=True)
        var = ms - mu * mu
        normed = (x - mu) * jax.lax.rsqrt(var + LN_EPS) * gamma + beta
        normed_ref[...] = normed.astype(jnp.bfloat16)

    qkv = jnp.dot(normed_ref[...], wqkv_ref[...],
                  preferred_element_type=jnp.float32) + bqkv_ref[...]
    qkv_ref[...] = qkv.astype(jnp.bfloat16)


# ---------------------------------------------------------------------------
# Kernel B: per-head attention -> context.
# Grid = (batch, head, q-tile), ALL parallel (megacore friendly); q-tile is the
# innermost axis so the (1, S, head_dim) K/V blocks are fetched once per (b, h) and
# not re-read per q-tile.  Softmax scale is pre-folded into the Q projection.
# Each head writes its context to its own lane-aligned column block of the bf16
# (B, S, D) ctx tensor; attention probabilities never touch HBM.
# ---------------------------------------------------------------------------
def _mha_ctx_kernel(q_ref, k_ref, v_ref, ctx_ref):
    q = q_ref[0]                                  # (tq, hd) bf16 (already scaled)
    k = k_ref[0]                                  # (S,  hd) bf16
    v = v_ref[0]                                  # (S,  hd) bf16

    # scores = q @ k^T  (contract last dims; no explicit transpose)
    s = jnp.einsum("qd,kd->qk", q, k, preferred_element_type=jnp.float32)
    s = s - jnp.max(s, axis=-1, keepdims=True)
    p = jnp.exp(s)
    p = p * pl.reciprocal(jnp.sum(p, axis=-1, keepdims=True), approx=True)

    ctx = jnp.dot(p.astype(jnp.bfloat16), v, preferred_element_type=jnp.float32)
    ctx_ref[0] = ctx.astype(jnp.bfloat16)


# ---------------------------------------------------------------------------
# Kernel C: output projection, a single K=D matmul over a large-M row tiling
# (replaces the previous per-head K=head_dim projection + output accumulation).
# ---------------------------------------------------------------------------
def _out_proj_kernel(ctx_ref, wo_ref, bo_ref, out_ref):
    out = jnp.dot(ctx_ref[...], wo_ref[...], preferred_element_type=jnp.float32)
    out_ref[...] = out + bo_ref[...]


def mamba_block_forward(hidden_states, residual, params, num_heads,
                        *, row_tile=256, q_tile=256, col_tile=512):
    """Block.forward: residual = (residual or 0) + hidden; hidden = MHA(LN(residual))."""
    B, S, D = hidden_states.shape
    assert D % num_heads == 0
    head_dim = D // num_heads
    assert head_dim % 128 == 0, "head_dim must be a multiple of the 128-lane width"
    H = num_heads
    R = B * S

    # ---- host-side parameter prep -------------------------------------------
    # Fold 1/sqrt(head_dim) into the Q rows of the fused QKV projection (and bias),
    # pre-transpose weights, cast MXU operands to bf16, pack LN params.
    scale = 1.0 / math.sqrt(head_dim)
    qscale = jnp.concatenate(
        [jnp.full((D,), scale, jnp.float32), jnp.ones((2 * D,), jnp.float32)])
    wqkv_t = (params["in_w"].astype(jnp.float32)
              * qscale[:, None]).T.astype(jnp.bfloat16)              # (D, 3D)
    bqkv = (params["in_b"].astype(jnp.float32) * qscale).reshape(1, 3 * D)
    wo_t = params["out_w"].T.astype(jnp.bfloat16)                    # (D, D)
    bo2d = params["out_b"].reshape(1, D).astype(jnp.float32)
    gb = jnp.zeros((8, D), jnp.float32)
    gb = gb.at[0, :].set(params["ln_g"]).at[1, :].set(params["ln_b"])

    hid2d = hidden_states.astype(jnp.float32).reshape(R, D)
    has_residual = residual is not None

    # ---- tile selection (sublane/lane aligned) -------------------------------
    rt = _pick_tile(R, row_tile, 16)
    # keep the double-buffered (D, tn) bf16 weight block under ~1/4 of the budget
    tn_cap = max(128, ((VMEM_LIMIT_BYTES // 4) // (4 * D)) // 128 * 128)
    tn = _pick_tile(3 * D, min(col_tile, tn_cap), 128)
    tq = _pick_tile(S, q_tile, 16)

    # ---- kernel A: fused (add) + LayerNorm + QKV projection -------------------
    hid_spec = pl.BlockSpec((rt, D), lambda i, j: (i, 0))
    gb_spec = pl.BlockSpec((8, D), lambda i, j: (0, 0))
    bqkv_spec = pl.BlockSpec((1, tn), lambda i, j: (0, j))
    wqkv_spec = pl.BlockSpec((D, tn), lambda i, j: (0, j))
    qkv_spec = pl.BlockSpec((rt, tn), lambda i, j: (i, j))
    grid_a = (R // rt, (3 * D) // tn)
    cp_a = pltpu.CompilerParams(dimension_semantics=("parallel", "arbitrary"),
                                vmem_limit_bytes=VMEM_LIMIT_BYTES)
    scratch_a = [pltpu.VMEM((rt, D), jnp.bfloat16)]      # cached LayerNorm output

    if has_residual:
        res2d = residual.astype(jnp.float32).reshape(R, D)
        res_out2d, qkv2d = pl.pallas_call(
            partial(_add_ln_qkv_kernel, has_residual=True),
            out_shape=(jax.ShapeDtypeStruct((R, D), jnp.float32),
                       jax.ShapeDtypeStruct((R, 3 * D), jnp.bfloat16)),
            grid_spec=pltpu.PrefetchScalarGridSpec(
                num_scalar_prefetch=0, grid=grid_a,
                in_specs=[hid_spec, hid_spec, gb_spec, bqkv_spec, wqkv_spec],
                out_specs=(pl.BlockSpec((rt, D), lambda i, j: (i, 0)), qkv_spec),
                scratch_shapes=scratch_a),
            compiler_params=cp_a,
        )(hid2d, res2d, gb, bqkv, wqkv_t)
        res_out = res_out2d.reshape(B, S, D)
    else:
        # residual is None: residual == hidden_states.  No zeros tensor is streamed
        # through the kernel and no residual writeback is issued.
        qkv2d = pl.pallas_call(
            partial(_add_ln_qkv_kernel, has_residual=False),
            out_shape=jax.ShapeDtypeStruct((R, 3 * D), jnp.bfloat16),
            grid_spec=pltpu.PrefetchScalarGridSpec(
                num_scalar_prefetch=0, grid=grid_a,
                in_specs=[hid_spec, gb_spec, bqkv_spec, wqkv_spec],
                out_specs=qkv_spec,
                scratch_shapes=scratch_a),
            compiler_params=cp_a,
        )(hid2d, gb, bqkv, wqkv_t)
        res_out = hidden_states.astype(jnp.float32)      # residual_in_fp32

    qkv = qkv2d.reshape(B, S, 3 * D)

    # ---- kernel B: per-head attention -> bf16 context tensor ------------------
    # q / k / v are three windows into the same fused qkv tensor, so the tensor is
    # passed once per spec (this fixes the previous in_specs/inputs mismatch).
    # TODO(synk): for long S, add a kv-tile grid axis with online softmax (flash).
    ctx = pl.pallas_call(
        _mha_ctx_kernel,
        out_shape=jax.ShapeDtypeStruct((B, S, D), jnp.bfloat16),
        grid_spec=pltpu.PrefetchScalarGridSpec(
            num_scalar_prefetch=0,
            grid=(B, H, S // tq),
            in_specs=[
                pl.BlockSpec((1, tq, head_dim), lambda b, h, qi: (b, qi, h)),
                pl.BlockSpec((1, S, head_dim), lambda b, h, qi: (b, 0, H + h)),
                pl.BlockSpec((1, S, head_dim), lambda b, h, qi: (b, 0, 2 * H + h)),
            ],
            out_specs=pl.BlockSpec((1, tq, head_dim),
                                   lambda b, h, qi: (b, qi, h))),
        compiler_params=pltpu.CompilerParams(
            dimension_semantics=("parallel", "parallel", "parallel"),
            vmem_limit_bytes=VMEM_LIMIT_BYTES),
    )(qkv, qkv, qkv)

    # ---- kernel C: single K=D output projection (big-M row tiling) ------------
    ctx2d = ctx.reshape(R, D)
    mixer2d = pl.pallas_call(
        _out_proj_kernel,
        out_shape=jax.ShapeDtypeStruct((R, D), jnp.float32),
        grid_spec=pltpu.PrefetchScalarGridSpec(
            num_scalar_prefetch=0, grid=(R // rt,),
            in_specs=[pl.BlockSpec((rt, D), lambda i: (i, 0)),
                      pl.BlockSpec((D, D), lambda i: (0, 0)),
                      pl.BlockSpec((1, D), lambda i: (0, 0))],
            out_specs=pl.BlockSpec((rt, D), lambda i: (i, 0))),
        compiler_params=pltpu.CompilerParams(
            dimension_semantics=("parallel",),
            vmem_limit_bytes=VMEM_LIMIT_BYTES),
    )(ctx2d, wo_t, bo2d)

    return mixer2d.reshape(B, S, D), res_out


# ---------------------------------------------------------------------------
# Pure-JAX reference (torch semantics: LN eps=1e-5, Linear y = x @ W.T + b,
# torch-style head split) for correctness checking.
# ---------------------------------------------------------------------------
def _ref_block(hidden, residual, params, num_heads):
    B, S, D = hidden.shape
    hd = D // num_heads
    res = hidden if residual is None else residual + hidden
    mu = jnp.mean(res, -1, keepdims=True)
    var = jnp.mean((res - mu) ** 2, -1, keepdims=True)
    normed = (res - mu) / jnp.sqrt(var + LN_EPS) * params["ln_g"] + params["ln_b"]
    qkv = normed @ params["in_w"].T + params["in_b"]
    q, k, v = qkv[..., :D], qkv[..., D:2 * D], qkv[..., 2 * D:]
    qh = q.reshape(B, S, num_heads, hd).transpose(0, 2, 1, 3)
    kh = k.reshape(B, S, num_heads, hd).transpose(0, 2, 1, 3)
    vh = v.reshape(B, S, num_heads, hd).transpose(0, 2, 1, 3)
    s = jnp.einsum("bhqd,bhkd->bhqk", qh, kh) / math.sqrt(hd)
    p = jax.nn.softmax(s, axis=-1)
    ctx = jnp.einsum("bhqk,bhkd->bhqd", p, vh).transpose(0, 2, 1, 3).reshape(B, S, D)
    out = ctx @ params["out_w"].T + params["out_b"]
    return out, res


if __name__ == "__main__":
    B, S, D, H = 2, 128, 256, 2          # head_dim = 128 (lane-aligned)

    key = jax.random.PRNGKey(0)
    ks = jax.random.split(key, 8)

    def w(k, shape, scale=0.02):
        return (scale * jax.random.normal(k, shape)).astype(jnp.float32)

    params = {
        "ln_g": (1.0 + 0.1 * jax.random.normal(ks[0], (D,))).astype(jnp.float32),
        "ln_b": w(ks[1], (D,), 0.05),
        "in_w": w(ks[2], (3 * D, D)),
        "in_b": w(ks[3], (3 * D,), 0.01),
        "out_w": w(ks[4], (D, D)),
        "out_b": w(ks[5], (D,), 0.01),
    }

    hidden = jax.random.normal(ks[6], (B, S, D), dtype=jnp.float32)
    prev_residual = jax.random.normal(ks[7], (B, S, D), dtype=jnp.float32)

    # first block in the stack: residual is None
    h1, r1 = mamba_block_forward(hidden, None, params, H)
    # a later block: residual provided
    h2, r2 = mamba_block_forward(hidden, prev_residual, params, H)
    jax.block_until_ready((h1, r1, h2, r2))

    ref_h1, ref_r1 = _ref_block(hidden, None, params, H)
    ref_h2, ref_r2 = _ref_block(hidden, prev_residual, params, H)

    # residual path is pure f32 add -> essentially exact
    assert jnp.allclose(r1, ref_r1, atol=1e-6), "residual (None path) mismatch"
    assert jnp.allclose(r2, ref_r2, atol=1e-6), "residual (add path) mismatch"
    # bf16 MXU operands + approx reciprocal -> loosened tolerance (f32 accumulation)
    assert jnp.allclose(h1, ref_h1, atol=2e-2, rtol=2e-2), "hidden (None path) mismatch"
    assert jnp.allclose(h2, ref_h2, atol=2e-2, rtol=2e-2), "hidden (add path) mismatch"

    print("KERNEL_OK")
</pallas_src>

<mosaic_0001>
module attributes {stable_mosaic.version = 11 : i64} {
  func.func @_add_ln_qkv_kernel(%arg0: i32, %arg1: i32, %arg2: memref<256x256xf32, #tpu.memory_space<vmem>>, %arg3: memref<8x256xf32, #tpu.memory_space<vmem>>, %arg4: memref<1x384xf32, #tpu.memory_space<vmem>>, %arg5: memref<256x384xbf16, #tpu.memory_space<vmem>>, %arg6: memref<256x384xbf16, #tpu.memory_space<vmem>>, %arg7: memref<256x256xbf16, #tpu.memory_space<vmem>>) attributes {dimension_semantics = [#tpu.dimension_semantics<parallel>, #tpu.dimension_semantics<arbitrary>], iteration_bounds = array<i64: 1, 2>, scalar_prefetch = 0 : i64, scratch_operands = 1 : i64, tpu.core_type = #tpu.core_type<tc>, window_params = [{transform_indices = @transform_0, window_bounds = array<i64: 256, 256>}, {pipeline_mode = #tpu.pipeline_mode<synchronous>, transform_indices = @transform_1, window_bounds = array<i64: 8, 256>}, {transform_indices = @transform_2, window_bounds = array<i64: 1, 384>}, {transform_indices = @transform_3, window_bounds = array<i64: 256, 384>}, {transform_indices = @transform_4, window_bounds = array<i64: 256, 384>}]} {
    %c0_i32 = arith.constant 0 : i32
    %0 = arith.cmpi eq, %arg1, %c0_i32 : i32
    %1 = arith.extui %0 : i1 to i32
    %c0_i32_0 = arith.constant 0 : i32
    %2 = arith.cmpi ne, %1, %c0_i32_0 : i32
    scf.if %2 {
      %c0_8 = arith.constant 0 : index
      %c0_9 = arith.constant 0 : index
      %11 = vector.load %arg2[%c0_8, %c0_9] : memref<256x256xf32, #tpu.memory_space<vmem>>, vector<256x256xf32>
      %c0_10 = arith.constant 0 : index
      %c0_11 = arith.constant 0 : index
      %12 = vector.load %arg3[%c0_10, %c0_11] : memref<8x256xf32, #tpu.memory_space<vmem>>, vector<1x256xf32>
      %c1 = arith.constant 1 : index
      %c0_12 = arith.constant 0 : index
      %13 = vector.load %arg3[%c1, %c0_12] : memref<8x256xf32, #tpu.memory_space<vmem>>, vector<1x256xf32>
      %cst_13 = arith.constant dense<0.000000e+00> : vector<256xf32>
      %14 = vector.multi_reduction <add>, %11, %cst_13 [1] : vector<256x256xf32> to vector<256xf32>
      %15 = vector.shape_cast %14 : vector<256xf32> to vector<256x1xf32>
      %cst_14 = arith.constant 2.560000e+02 : f32
      %16 = vector.broadcast %cst_14 : f32 to vector<256x1xf32>
      %17 = arith.divf %15, %16 : vector<256x1xf32>
      %18 = arith.mulf %11, %11 : vector<256x256xf32>
      %cst_15 = arith.constant dense<0.000000e+00> : vector<256xf32>
      %19 = vector.multi_reduction <add>, %18, %cst_15 [1] : vector<256x256xf32> to vector<256xf32>
      %20 = vector.shape_cast %19 : vector<256xf32> to vector<256x1xf32>
      %cst_16 = arith.constant 2.560000e+02 : f32
      %21 = vector.broadcast %cst_16 : f32 to vector<256x1xf32>
      %22 = arith.divf %20, %21 : vector<256x1xf32>
      %23 = arith.mulf %17, %17 : vector<256x1xf32>
      %24 = arith.subf %22, %23 : vector<256x1xf32>
      %25 = vector.broadcast %17 : vector<256x1xf32> to vector<256x256xf32>
      %26 = arith.subf %11, %25 : vector<256x256xf32>
      %cst_17 = arith.constant 9.99999974E-6 : f32
      %27 = vector.broadcast %cst_17 : f32 to vector<256x1xf32>
      %28 = arith.addf %24, %27 : vector<256x1xf32>
      %29 = math.rsqrt %28 : vector<256x1xf32>
      %30 = vector.broadcast %29 : vector<256x1xf32> to vector<256x256xf32>
      %31 = arith.mulf %26, %30 : vector<256x256xf32>
      %32 = vector.broadcast %12 : vector<1x256xf32> to vector<256x256xf32>
      %33 = arith.mulf %31, %32 : vector<256x256xf32>
      %34 = vector.broadcast %13 : vector<1x256xf32> to vector<256x256xf32>
      %35 = arith.addf %33, %34 : vector<256x256xf32>
      %36 = arith.truncf %35 : vector<256x256xf32> to vector<256x256xbf16>
      %c0_18 = arith.constant 0 : index
      %c0_19 = arith.constant 0 : index
      %37 = vector.load %arg7[%c0_18, %c0_19] : memref<256x256xbf16, #tpu.memory_space<vmem>>, vector<256x256xbf16>
      tpu.vector_store %arg7[%c0_18, %c0_19], %36 {strides = array<i32>} : memref<256x256xbf16, #tpu.memory_space<vmem>>, vector<256x256xbf16>,
    } else {
    }
    %c0 = arith.constant 0 : index
    %c0_1 = arith.constant 0 : index
    %3 = vector.load %arg7[%c0, %c0_1] : memref<256x256xbf16, #tpu.memory_space<vmem>>, vector<256x256xbf16>
    %c0_2 = arith.constant 0 : index
    %c0_3 = arith.constant 0 : index
    %4 = vector.load %arg5[%c0_2, %c0_3] : memref<256x384xbf16, #tpu.memory_space<vmem>>, vector<256x384xbf16>
    %cst = arith.constant dense<0.000000e+00> : vector<256x384xf32>
    %5 = tpu.matmul %3, %4, %cst {dimension_numbers = #tpu.dot_dimension_numbers<[1], [0], [0], [1], [0, 0, 1, 1], [], []>} : vector<256x256xbf16>, vector<256x384xbf16>, vector<256x384xf32> -> vector<256x384xf32>
    %c0_4 = arith.constant 0 : index
    %c0_5 = arith.constant 0 : index
    %6 = vector.load %arg4[%c0_4, %c0_5] : memref<1x384xf32, #tpu.memory_space<vmem>>, vector<1x384xf32>
    %7 = vector.broadcast %6 : vector<1x384xf32> to vector<256x384xf32>
    %8 = arith.addf %5, %7 : vector<256x384xf32>
    %9 = arith.truncf %8 : vector<256x384xf32> to vector<256x384xbf16>
    %c0_6 = arith.constant 0 : index
    %c0_7 = arith.constant 0 : index
    %10 = vector.load %arg6[%c0_6, %c0_7] : memref<256x384xbf16, #tpu.memory_space<vmem>>, vector<256x384xbf16>
    tpu.vector_store %arg6[%c0_6, %c0_7], %9 {strides = array<i32>} : memref<256x384xbf16, #tpu.memory_space<vmem>>, vector<256x384xbf16>,
    return
  }
  func.func @transform_0(%arg0: i32, %arg1: i32) -> (i32, i32) {
    %c0_i32 = arith.constant 0 : i32
    %c0_i32_0 = arith.constant 0 : i32
    return %arg0, %c0_i32 : i32, i32
  }
  func.func @transform_1(%arg0: i32, %arg1: i32) -> (i32, i32) {
    %c0_i32 = arith.constant 0 : i32
    %c0_i32_0 = arith.constant 0 : i32
    %c0_i32_1 = arith.constant 0 : i32
    return %c0_i32, %c0_i32_0 : i32, i32
  }
  func.func @transform_2(%arg0: i32, %arg1: i32) -> (i32, i32) {
    %c0_i32 = arith.constant 0 : i32
    %c0_i32_0 = arith.constant 0 : i32
    return %c0_i32, %arg1 : i32, i32
  }
  func.func @transform_3(%arg0: i32, %arg1: i32) -> (i32, i32) {
    %c0_i32 = arith.constant 0 : i32
    %c0_i32_0 = arith.constant 0 : i32
    return %c0_i32, %arg1 : i32, i32
  }
  func.func @transform_4(%arg0: i32, %arg1: i32) -> (i32, i32) {
    %c0_i32 = arith.constant 0 : i32
    return %arg0, %arg1 : i32, i32
  }
}

</mosaic_0001>

<llo_original>
// kernel: tpu_custom_call.1
$region0: #{tpu_custom_call.1}
  #allocation0 [shape = 'u32[]', space=smem, size = 0x4, offset = 0x4, fixed_abs, tag = 'smem constant byte address 0x4 - core index']
  #allocation1 [shape = 'u32[144,128]{1,0:T(1,128)}', space=vmem, size = 0x12000, scoped, tag = 'internal scratch']
  #allocation2 [shape = 'bf16[256,256]{1,0:T(8,128)(2,1)}', space=vmem, size = 0x20000, scoped, tag = 'scratch operand']
  %s0 = inlined_call_operand.hbm [shape: f32[256,256], index: 0, kind: input, shape index: {}]
  %s1 = inlined_call_operand.hbm [shape: f32[8,256], index: 1, kind: input, shape index: {}]
  %s2 = inlined_call_operand.hbm [shape: f32[1,768], index: 2, kind: input, shape index: {}]
  %s3 = inlined_call_operand.hbm [shape: bf16[256,768], index: 3, kind: input, shape index: {}]
  %s4 = inlined_call_operand.hbm [shape: bf16[256,768], index: 4, kind: output, shape index: {}]
  %s5 = sld [smem:[#allocation0]]
  $region69: #{tpu_custom_call.1} parent=0
    _
  %s7 = ssub.s32 1, %s5
  %s8 = scalar_select 0, %s7, %s5
  $region1: #{tpu_custom_call.1} parent=0
    #allocation3 [shape = 'u8[262144]{0}', space=vmem, size = 0x40000, scoped, tag = 'input window, operand 0, single buffered']
    #allocation4 [shape = 's32[2]{0}', space=sflag, size = 0x8, scoped, tag = 'scoped memory for tpu_custom_call.1']
    #allocation5 [shape = 's32[2]{0}', space=sflag, size = 0x8, scoped, tag = 'scoped memory for tpu_custom_call.1']
    #allocation6 [shape = 'u8[8192]{0}', space=vmem, size = 0x2000, scoped, tag = 'input window, operand 1, single buffered']
    #allocation7 [shape = 's32[1]{0}', space=sflag, size = 0x4, scoped, tag = 'scoped memory for tpu_custom_call.1']
    #allocation8 [shape = 'u8[3072]{0}', space=vmem, size = 0xc00, scoped, tag = 'input window, operand 2']
    #allocation9 [shape = 'u8[393216]{0}', space=vmem, size = 0x60000, scoped, tag = 'input window, operand 3']
    #allocation10 [shape = 'u8[393216]{0}', space=vmem, size = 0x60000, scoped, tag = 'output window, operand 0']
    %9 = vsyncpa [#allocation4], 0
    %10 = vsyncpa [#allocation7], 0
    %11 = vsyncpa [#allocation5], 0
    %s12 = scalar_lea.sflag [#allocation5], 1
    %13 = vsyncpa %s12, 0
    loop: start=0, step=1, limit=4
    $region2: #{tpu_custom_call.1} parent=1 // loop_pre_header
      _
    $region3: #{tpu_custom_call.1} parent=1 // loop_header
      %s15 = sphi 0, %s19
      %p16 = scmp.ge.s32.totalorder %s15, 4
      %s22 = sphi 0, %s34
      %s23 = sphi 0, %s30
      %s24 = sphi 0, %s22
      %s25 = sphi 0, %s23
      %s26 = sphi 0, %s24
      %s27 = sphi 0, %s25
      %s37 = sphi 0, %s39
      %s40 = sphi 0, %s37
      %s41 = sphi 0, %s40
      %s57 = sphi 0, %s41
      %s61 = sphi 0, %s61
      %s63 = sphi 0, %s61
      %s64 = sphi 0, %s63
      %s78 = sphi 0, %s64
      %s84 = sphi 0, %s86
      %s87 = sphi 0, %s84
      %s88 = sphi 0, %s87
      %s104 = sphi 0, %s88
      %s110 = sphi 0, %s112
      %s113 = sphi 0, %s110
      %s114 = sphi 0, %s113
      %s130 = sphi 0, %s114
      %s138 = sphi 0, %s140
      %s141 = sphi 0, %s138
      %s142 = sphi 0, %s141
      %s158 = sphi 0, %s142
    $region4: #{tpu_custom_call.1} parent=1 // loop_header_branch
      %18 = sbr.rel (%p16) target = $region8
    $region5: #{tpu_custom_call.1} parent=1 // loop_body
      %s20 = ssub.s32 %s15, 1
      %s21 = ssub.s32 %s15, 2
      %s28 = sadd.s32 1, %s23
      %p29 = scmp.ge.s32.totalorder %s28, 2
      %s30 = scalar_select %p29, 0, %s28
      %s31 = sadd.s32 1, %s22
      %s32 = scalar_select %p29, %s31, %s22
      %p33 = scmp.ge.s32.totalorder %s32, 1
      %s34 = scalar_select %p33, 0, %s32
      %s35 = ssub.s32 %s22, %s34
      %p36 = scmp.eq.s32.totalorder %s35, 0
      %s38 = sadd.s32 %s37, 1
      %s39 = scalar_select %p36, %s37, %s38
      %p42 = pneg %p36
      %p43 = scmp.eq.s32.totalorder %s15, 1
      %p44 = por %p42, %p43
      %p45 = scmp.ne.s32.totalorder %s37, %s40
      %p46 = scmp.eq.s32.totalorder %s15, 0
      %p47 = por %p45, %p46
      %p48 = scmp.ne.s32.totalorder %s37, %s40
      %p49 = scmp.eq.s32.totalorder %s20, 1
      %p50 = por %p48, %p49
      %p51 = scmp.ne.s32.totalorder %s40, %s41
      %p52 = scmp.eq.s32.totalorder %s20, 0
      %p53 = por %p51, %p52
      %p54 = scmp.ne.s32.totalorder %s40, %s41
      %p55 = scmp.eq.s32.totalorder %s21, 1
      %p56 = por %p54, %p55
      %p58 = scmp.ne.s32.totalorder %s41, %s57
      %p59 = scmp.eq.s32.totalorder %s21, 0
      %p60 = por %p58, %p59
      %s62 = sadd.s32 %s61, 1
      %p65 = scmp.eq.s32.totalorder %s15, 1
      %p66 = scmp.ne.s32.totalorder %s61, %s63
      %p67 = scmp.eq.s32.totalorder %s15, 0
      %p68 = por %p66, %p67
      %p69 = scmp.ne.s32.totalorder %s61, %s63
      %p70 = scmp.eq.s32.totalorder %s20, 1
      %p71 = por %p69, %p70
      %p72 = scmp.ne.s32.totalorder %s63, %s64
      %p73 = scmp.eq.s32.totalorder %s20, 0
      %p74 = por %p72, %p73
      %p75 = scmp.ne.s32.totalorder %s63, %s64
      %p76 = scmp.eq.s32.totalorder %s21, 1
      %p77 = por %p75, %p76
      %p79 = scmp.ne.s32.totalorder %s64, %s78
      %p80 = scmp.eq.s32.totalorder %s21, 0
      %p81 = por %p79, %p80
      %s82 = ssub.s32 %s23, %s30
      %p83 = scmp.eq.s32.totalorder %s82, 0
      %s85 = sadd.s32 %s84, 1
      %s86 = scalar_select %p83, %s84, %s85
      %p89 = pneg %p83
      %p90 = scmp.eq.s32.totalorder %s15, 1
      %p91 = por %p89, %p90
      %p92 = scmp.ne.s32.totalorder %s84, %s87
      %p93 = scmp.eq.s32.totalorder %s15, 0
      %p94 = por %p92, %p93
      %p95 = scmp.ne.s32.totalorder %s84, %s87
      %p96 = scmp.eq.s32.totalorder %s20, 1
      %p97 = por %p95, %p96
      %p98 = scmp.ne.s32.totalorder %s87, %s88
      %p99 = scmp.eq.s32.totalorder %s20, 0
      %p100 = por %p98, %p99
      %p101 = scmp.ne.s32.totalorder %s87, %s88
      %p102 = scmp.eq.s32.totalorder %s21, 1
      %p103 = por %p101, %p102
      %p105 = scmp.ne.s32.totalorder %s88, %s104
      %p106 = scmp.eq.s32.totalorder %s21, 0
      %p107 = por %p105, %p106
      %s108 = ssub.s32 %s23, %s30
      %p109 = scmp.eq.s32.totalorder %s108, 0
      %s111 = sadd.s32 %s110, 1
      %s112 = scalar_select %p109, %s110, %s111
      %p115 = pneg %p109
      %p116 = scmp.eq.s32.totalorder %s15, 1
      %p117 = por %p115, %p116
      %p118 = scmp.ne.s32.totalorder %s110, %s113
      %p119 = scmp.eq.s32.totalorder %s15, 0
      %p120 = por %p118, %p119
      %p121 = scmp.ne.s32.totalorder %s110, %s113
      %p122 = scmp.eq.s32.totalorder %s20, 1
      %p123 = por %p121, %p122
      %p124 = scmp.ne.s32.totalorder %s113, %s114
      %p125 = scmp.eq.s32.totalorder %s20, 0
      %p126 = por %p124, %p125
      %p127 = scmp.ne.s32.totalorder %s113, %s114
      %p128 = scmp.eq.s32.totalorder %s21, 1
      %p129 = por %p127, %p128
      %p131 = scmp.ne.s32.totalorder %s114, %s130
      %p132 = scmp.eq.s32.totalorder %s21, 0
      %p133 = por %p131, %p132
      %s134 = ssub.s32 %s22, %s34
      %s135 = ssub.s32 %s23, %s30
      %s136 = sor.u32 %s134, %s135
      %p137 = scmp.eq.s32.totalorder %s136, 0
      %s139 = sadd.s32 %s138, 1
      %s140 = scalar_select %p137, %s138, %s139
      %p143 = pneg %p137
      %p144 = scmp.eq.s32.totalorder %s15, 1
      %p145 = por %p143, %p144
      %p146 = scmp.ne.s32.totalorder %s138, %s141
      %p147 = scmp.eq.s32.totalorder %s15, 0
      %p148 = por %p146, %p147
      %p149 = scmp.ne.s32.totalorder %s138, %s141
      %p150 = scmp.eq.s32.totalorder %s20, 1
      %p151 = por %p149, %p150
      %p152 = scmp.ne.s32.totalorder %s141, %s142
      %p153 = scmp.eq.s32.totalorder %s20, 0
      %p154 = por %p152, %p153
      %p155 = scmp.ne.s32.totalorder %s141, %s142
      %p156 = scmp.eq.s32.totalorder %s21, 1
      %p157 = por %p155, %p156
      %p159 = scmp.ne.s32.totalorder %s142, %s158
      %p160 = scmp.eq.s32.totalorder %s21, 0
      %p161 = por %p159, %p160
      %p162 = scmp.le.s32.totalorder 1, %s15
      %p163 = scmp.lt.s32.totalorder %s15, 3
      %p164 = pnand %p162, %p163
      %p165 = pneg %p164
      // Predicated region
      $region9: #{tpu_custom_call.1} parent=5 // pred_check
        _
      $region10: #{tpu_custom_call.1} parent=5 // pred_check_branch
        %167 = sbr.rel (%p164) target = $region12
      $region11: #{tpu_custom_call.1} parent=5 // pred_region
        %s168 = ssub.s32 %s15, 1
        // Predicated region
        $region13: #{tpu_custom_call.1} parent=11 // pred_check
          %p169 = pneg %p53
        $region14: #{tpu_custom_call.1} parent=11 // pred_check_branch
          %171 = sbr.rel (%p169) target = $region16
        $region15: #{tpu_custom_call.1} parent=11 // pred_region
          %s172 = smul.u32 32, %s24
          %s174 = ssub.s32 8192, 8192
          %175 = vsyncadd [#allocation4], %s174
          %s176 = smul.addr %s172, 2
          %s177 = smul.addr %s176, 128
          %s178 = scalar_lea.hbm %s0, %s177
          %s179 = sshll.u32 [#allocation3], 4
          %s180 = int_to_ptr.vmem [resolvable:$true] %s179
          %185 = dma.hbm_to_vmem [thread:$0]  %s178, 8192, %s180, [#allocation4], 256, 256, 16
        $region16: #{tpu_custom_call.1} parent=11 // pred_fallthru
          _
        // Predicated region
        $region17: #{tpu_custom_call.1} parent=11 // pred_check
          %p186 = pneg %p74
        $region18: #{tpu_custom_call.1} parent=11 // pred_check_branch
          %188 = sbr.rel (%p186) target = $region20
        $region19: #{tpu_custom_call.1} parent=11 // pred_region
          %s190 = ssub.s32 256, 256
          %191 = vsyncadd [#allocation7], %s190
          %s193 = sshll.u32 [#allocation6], 4
          %s194 = int_to_ptr.vmem [resolvable:$true] %s193
          %196 = dma.hbm_to_vmem [thread:$0]  %s1, 256, %s194, [#allocation7]
        $region20: #{tpu_custom_call.1} parent=11 // pred_fallthru
          _
      $region12: #{tpu_custom_call.1} parent=5 // pred_fallthru
        _
      %p197 = scmp.lt.s32.totalorder %s15, 2
      // Predicated region
      $region21: #{tpu_custom_call.1} parent=5 // pred_check
        %p198 = pneg %p197
      $region22: #{tpu_custom_call.1} parent=5 // pred_check_branch
        %200 = sbr.rel (%p198) target = $region24
      $region23: #{tpu_custom_call.1} parent=5 // pred_region
        // Predicated region
        $region25: #{tpu_custom_call.1} parent=23 // pred_check
          %p201 = pneg %p94
        $region26: #{tpu_custom_call.1} parent=23 // pred_check_branch
          %203 = sbr.rel (%p201) target = $region28
        $region27: #{tpu_custom_call.1} parent=23 // pred_region
          %s204 = sand.u32 %s15, 1
          %s205 = scalar_lea.sflag [#allocation4], %s204
          %s206 = sand.u32 %s84, 1
          %s207 = smul.addr %s206, 3
          %s208 = scalar_lea.vmem [#allocation8], %s207
          %s209 = smul.u32 3, %s23
          %s211 = ssub.s32 48, 48
          %212 = vsyncadd %s205, %s211
          %s213 = smul.addr %s209, 16
          %s214 = scalar_lea.hbm %s2, %s213
          %s216 = sshll.u32 %s208, 4
          %s217 = int_to_ptr.vmem [resolvable:$true] %s216
          %219 = dma.hbm_to_vmem [thread:$0]  %s214, 48, %s217, %s205
        $region28: #{tpu_custom_call.1} parent=23 // pred_fallthru
          _
        // Predicated region
        $region29: #{tpu_custom_call.1} parent=23 // pred_check
          %p220 = pneg %p120
        $region30: #{tpu_custom_call.1} parent=23 // pred_check_branch
          %222 = sbr.rel (%p220) target = $region32
        $region31: #{tpu_custom_call.1} parent=23 // pred_region
          %s223 = sand.u32 %s15, 1
          %s224 = scalar_lea.sflag [#allocation4], %s223
          %s225 = sand.u32 %s110, 1
          %s226 = smul.addr %s225, 384
          %s227 = scalar_lea.vmem [#allocation9], %s226
          %s228 = smul.u32 3, %s23
          %s230 = ssub.s32 6144, 6144
          %231 = vsyncadd %s224, %s230
          %s232 = smul.addr %s228, 64
          %s233 = scalar_lea.hbm %s3, %s232
          %s234 = sshll.u32 %s227, 4
          %s235 = int_to_ptr.vmem [resolvable:$true] %s234
          %240 = dma.hbm_to_vmem [thread:$0]  %s233, 6144, %s235, %s224, 384, 192, 12
        $region32: #{tpu_custom_call.1} parent=23 // pred_fallthru
          _
      $region24: #{tpu_custom_call.1} parent=5 // pred_fallthru
        _
      %p241 = scmp.le.s32.totalorder 1, %s15
      %p242 = scmp.lt.s32.totalorder %s15, 3
      %p243 = pnand %p241, %p242
      %p244 = pneg %p243
      // Predicated region
      $region33: #{tpu_custom_call.1} parent=5 // pred_check
        _
      $region34: #{tpu_custom_call.1} parent=5 // pred_check_branch
        %246 = sbr.rel (%p243) target = $region36
      $region35: #{tpu_custom_call.1} parent=5 // pred_region
        %s247 = ssub.s32 %s15, 1
        // Predicated region
        $region37: #{tpu_custom_call.1} parent=35 // pred_check
          %p248 = pneg %p53
        $region38: #{tpu_custom_call.1} parent=35 // pred_check_branch
          %250 = sbr.rel (%p248) target = $region40
        $region39: #{tpu_custom_call.1} parent=35 // pred_region
          %251 = dma.done [#allocation4], 8192
        $region40: #{tpu_custom_call.1} parent=35 // pred_fallthru
          _
        // Predicated region
        $region41: #{tpu_custom_call.1} parent=35 // pred_check
          %p252 = pneg %p74
        $region42: #{tpu_custom_call.1} parent=35 // pred_check_branch
          %254 = sbr.rel (%p252) target = $region44
        $region43: #{tpu_custom_call.1} parent=35 // pred_region
          %255 = dma.done [#allocation7], 256
        $region44: #{tpu_custom_call.1} parent=35 // pred_fallthru
          _
        %s256 = sand.u32 %s20, 1
        %s257 = scalar_lea.sflag [#allocation4], %s256
        %s258 = sand.u32 %s87, 1
        %s259 = smul.addr %s258, 3
        %s260 = scalar_lea.vmem [#allocation8], %s259
        // Predicated region
        $region45: #{tpu_custom_call.1} parent=35 // pred_check
          %p261 = pneg %p100
        $region46: #{tpu_custom_call.1} parent=35 // pred_check_branch
          %263 = sbr.rel (%p261) target = $region48
        $region47: #{tpu_custom_call.1} parent=35 // pred_region
          %264 = dma.done %s257, 48
        $region48: #{tpu_custom_call.1} parent=35 // pred_fallthru
          _
        %s265 = sand.u32 %s20, 1
        %s266 = scalar_lea.sflag [#allocation4], %s265
        %s267 = sand.u32 %s113, 1
        %s268 = smul.addr %s267, 384
        %s269 = scalar_lea.vmem [#allocation9], %s268
        // Predicated region
        $region49: #{tpu_custom_call.1} parent=35 // pred_check
          %p270 = pneg %p126
        $region50: #{tpu_custom_call.1} parent=35 // pred_check_branch
          %272 = sbr.rel (%p270) target = $region52
        $region51: #{tpu_custom_call.1} parent=35 // pred_region
          %273 = dma.done %s266, 6144
        $region52: #{tpu_custom_call.1} parent=35 // pred_fallthru
          _
        %p274 = pneg %p53
        %p275 = pneg %p50
        %p276 = pneg %p74
        %p277 = pneg %p71
        %s278 = sand.u32 %s20, 1
        %s279 = scalar_lea.sflag [#allocation4], %s278
        %s280 = sand.u32 %s87, 1
        %s281 = smul.addr %s280, 3
        %s282 = scalar_lea.vmem [#allocation8], %s281
        %p283 = pneg %p100
        %p284 = pneg %p97
        %s285 = sand.u32 %s20, 1
        %s286 = scalar_lea.sflag [#allocation4], %s285
        %s287 = sand.u32 %s113, 1
        %s288 = smul.addr %s287, 384
        %s289 = scalar_lea.vmem [#allocation9], %s288
        %p290 = pneg %p126
        %p291 = pneg %p123
        %p292 = pneg %p154
        %p293 = pneg %p151
        %s294 = sand.u32 %s141, 1
        %s295 = scalar_lea.sflag [#allocation5], %s294
        %s296 = sand.u32 %s141, 1
        %s297 = smul.addr %s296, 384
        %s298 = scalar_lea.vmem [#allocation10], %s297
        %s299 = smul.u32 32, %s24
        %s300 = smul.u32 3, %s25
        %s301 = smul.u32 3, %s25
        %s302 = smul.u32 32, %s24
        %s303 = smul.u32 3, %s25
        %p305 = scmp.eq.s32.totalorder %s25, 0
        // Predicated region
        $region53: #{tpu_custom_call.1} parent=35 // pred_check
          %p306 = pneg %p305
        $region54: #{tpu_custom_call.1} parent=35 // pred_check_branch
          %308 = sbr.rel (%p306) target = $region56
        $region55: #{tpu_custom_call.1} parent=35 // pred_region
          %v309 = vld [vmem:[#allocation3] sm:$0xff]
          %v310 = vld [vmem:[#allocation3 + $0x8] sm:$0xff]
          %v311 = vld [vmem:[#allocation3 + $0x10] sm:$0xff]
          %v312 = vld [vmem:[#allocation3 + $0x18] sm:$0xff]
          %v313 = vld [vmem:[#allocation3 + $0x20] sm:$0xff]
          %v314 = vld [vmem:[#allocation3 + $0x28] sm:$0xff]
          %v315 = vld [vmem:[#allocation3 + $0x30] sm:$0xff]
          %v316 = vld [vmem:[#allocation3 + $0x38] sm:$0xff]
          %v317 = vld [vmem:[#allocation3 + $0x40] sm:$0xff]
          %v318 = vld [vmem:[#allocation3 + $0x48] sm:$0xff]
          %v319 = vld [vmem:[#allocation3 + $0x50] sm:$0xff]
          %v320 = vld [vmem:[#allocation3 + $0x58] sm:$0xff]
          %v321 = vld [vmem:[#allocation3 + $0x60] sm:$0xff]
          %v322 = vld [vmem:[#allocation3 + $0x68] sm:$0xff]
          %v323 = vld [vmem:[#allocation3 + $0x70] sm:$0xff]
          %v324 = vld [vmem:[#allocation3 + $0x78] sm:$0xff]
          %v325 = vld [vmem:[#allocation3 + $0x80] sm:$0xff]
          %v326 = vld [vmem:[#allocation3 + $0x88] sm:$0xff]
          %v327 = vld [vmem:[#allocation3 + $0x90] sm:$0xff]
          %v328 = vld [vmem:[#allocation3 + $0x98] sm:$0xff]
          %v329 = vld [vmem:[#allocation3 + $0xa0] sm:$0xff]
          %v330 = vld [vmem:[#allocation3 + $0xa8] sm:$0xff]
          %v331 = vld [vmem:[#allocation3 + $0xb0] sm:$0xff]
          %v332 = vld [vmem:[#allocation3 + $0xb8] sm:$0xff]
          %v333 = vld [vmem:[#allocation3 + $0xc0] sm:$0xff]
          %v334 = vld [vmem:[#allocation3 + $0xc8] sm:$0xff]
          %v335 = vld [vmem:[#allocation3 + $0xd0] sm:$0xff]
          %v336 = vld [vmem:[#allocation3 + $0xd8] sm:$0xff]
          %v337 = vld [vmem:[#allocation3 + $0xe0] sm:$0xff]
          %v338 = vld [vmem:[#allocation3 + $0xe8] sm:$0xff]
          %v339 = vld [vmem:[#allocation3 + $0xf0] sm:$0xff]
          %v340 = vld [vmem:[#allocation3 + $0xf8] sm:$0xff]
          %v341 = vld [vmem:[#allocation3 + $0x100] sm:$0xff]
          %v342 = vld [vmem:[#allocation3 + $0x108] sm:$0xff]
          %v343 = vld [vmem:[#allocation3 + $0x110] sm:$0xff]
          %v344 = vld [vmem:[#allocation3 + $0x118] sm:$0xff]
          %v345 = vld [vmem:[#allocation3 + $0x120] sm:$0xff]
          %v346 = vld [vmem:[#allocation3 + $0x128] sm:$0xff]
          %v347 = vld [vmem:[#allocation3 + $0x130] sm:$0xff]
          %v348 = vld [vmem:[#allocation3 + $0x138] sm:$0xff]
          %v349 = vld [vmem:[#allocation3 + $0x140] sm:$0xff]
          %v350 = vld [vmem:[#allocation3 + $0x148] sm:$0xff]
          %v351 = vld [vmem:[#allocation3 + $0x150] sm:$0xff]
          %v352 = vld [vmem:[#allocation3 + $0x158] sm:$0xff]
          %v353 = vld [vmem:[#allocation3 + $0x160] sm:$0xff]
          %v354 = vld [vmem:[#allocation3 + $0x168] sm:$0xff]
          %v355 = vld [vmem:[#allocation3 + $0x170] sm:$0xff]
          %v356 = vld [vmem:[#allocation3 + $0x178] sm:$0xff]
          %v357 = vld [vmem:[#allocation3 + $0x180] sm:$0xff]
          %v358 = vld [vmem:[#allocation3 + $0x188] sm:$0xff]
          %v359 = vld [vmem:[#allocation3 + $0x190] sm:$0xff]
          %v360 = vld [vmem:[#allocation3 + $0x198] sm:$0xff]
          %v361 = vld [vmem:[#allocation3 + $0x1a0] sm:$0xff]
          %v362 = vld [vmem:[#allocation3 + $0x1a8] sm:$0xff]
          %v363 = vld [vmem:[#allocation3 + $0x1b0] sm:$0xff]
          %v364 = vld [vmem:[#allocation3 + $0x1b8] sm:$0xff]
          %v365 = vld [vmem:[#allocation3 + $0x1c0] sm:$0xff]
          %v366 = vld [vmem:[#allocation3 + $0x1c8] sm:$0xff]
          %v367 = vld [vmem:[#allocation3 + $0x1d0] sm:$0xff]
          %v368 = vld [vmem:[#allocation3 + $0x1d8] sm:$0xff]
          %v369 = vld [vmem:[#allocation3 + $0x1e0] sm:$0xff]
          %v370 = vld [vmem:[#allocation3 + $0x1e8] sm:$0xff]
          %v371 = vld [vmem:[#allocation3 + $0x1f0] sm:$0xff]
          %v372 = vld [vmem:[#allocation3 + $0x1f8] sm:$0xff]
          %v373 = vld [vmem:[#allocation6] ss:$8 sm:$0x3]
          %s374 = scalar_lea.vmem [#allocation6], 1
          %v375 = vld [vmem:[%s374] ss:$8 sm:$0x3]
          %v376 = vadd.f32 %v309, %v310
          %377 = vadd.xlane.f32.xlu0 %v376
          %v378 = vpop.xlane.xlu0 %377
          %v379 = vadd.f32 %v311, %v312
          %380 = vadd.xlane.f32.xlu0 %v379
          %v381 = vpop.xlane.xlu0 %380
          %v382 = vadd.f32 %v313, %v314
          %383 = vadd.xlane.f32.xlu0 %v382
          %v384 = vpop.xlane.xlu0 %383
          %v385 = vadd.f32 %v315, %v316
          %386 = vadd.xlane.f32.xlu0 %v385
          %v387 = vpop.xlane.xlu0 %386
          %v388 = vadd.f32 %v317, %v318
          %389 = vadd.xlane.f32.xlu0 %v388
          %v390 = vpop.xlane.xlu0 %389
          %v391 = vadd.f32 %v319, %v320
          %392 = vadd.xlane.f32.xlu0 %v391
          %v393 = vpop.xlane.xlu0 %392
          %v394 = vadd.f32 %v321, %v322
          %395 = vadd.xlane.f32.xlu0 %v394
          %v396 = vpop.xlane.xlu0 %395
          %v397 = vadd.f32 %v323, %v324
          %398 = vadd.xlane.f32.xlu0 %v397
          %v399 = vpop.xlane.xlu0 %398
          %v400 = vadd.f32 %v325, %v326
          %401 = vadd.xlane.f32.xlu0 %v400
          %v402 = vpop.xlane.xlu0 %401
          %v403 = vadd.f32 %v327, %v328
          %404 = vadd.xlane.f32.xlu0 %v403
          %v405 = vpop.xlane.xlu0 %404
          %v406 = vadd.f32 %v329, %v330
          %407 = vadd.xlane.f32.xlu0 %v406
          %v408 = vpop.xlane.xlu0 %407
          %v409 = vadd.f32 %v331, %v332
          %410 = vadd.xlane.f32.xlu0 %v409
          %v411 = vpop.xlane.xlu0 %410
          %v412 = vadd.f32 %v333, %v334
          %413 = vadd.xlane.f32.xlu0 %v412
          %v414 = vpop.xlane.xlu0 %413
          %v415 = vadd.f32 %v335, %v336
          %416 = vadd.xlane.f32.xlu0 %v415
          %v417 = vpop.xlane.xlu0 %416
          %v418 = vadd.f32 %v337, %v338
          %419 = vadd.xlane.f32.xlu0 %v418
          %v420 = vpop.xlane.xlu0 %419
          %v421 = vadd.f32 %v339, %v340
          %422 = vadd.xlane.f32.xlu0 %v421
          %v423 = vpop.xlane.xlu0 %422
          %v424 = vadd.f32 %v341, %v342
          %425 = vadd.xlane.f32.xlu0 %v424
          %v426 = vpop.xlane.xlu0 %425
          %v427 = vadd.f32 %v343, %v344
          %428 = vadd.xlane.f32.xlu0 %v427
          %v429 = vpop.xlane.xlu0 %428
          %v430 = vadd.f32 %v345, %v346
          %431 = vadd.xlane.f32.xlu0 %v430
          %v432 = vpop.xlane.xlu0 %431
          %v433 = vadd.f32 %v347, %v348
          %434 = vadd.xlane.f32.xlu0 %v433
          %v435 = vpop.xlane.xlu0 %434
          %v436 = vadd.f32 %v349, %v350
          %437 = vadd.xlane.f32.xlu0 %v436
          %v438 = vpop.xlane.xlu0 %437
          %v439 = vadd.f32 %v351, %v352
          %440 = vadd.xlane.f32.xlu0 %v439
          %v441 = vpop.xlane.xlu0 %440
          %v442 = vadd.f32 %v353, %v354
          %443 = vadd.xlane.f32.xlu0 %v442
          %v444 = vpop.xlane.xlu0 %443
          %v445 = vadd.f32 %v355, %v356
          %446 = vadd.xlane.f32.xlu0 %v445
          %v447 = vpop.xlane.xlu0 %446
          %v448 = vadd.f32 %v357, %v358
          %449 = vadd.xlane.f32.xlu0 %v448
          %v450 = vpop.xlane.xlu0 %449
          %v451 = vadd.f32 %v359, %v360
          %452 = vadd.xlane.f32.xlu0 %v451
          %v453 = vpop.xlane.xlu0 %452
          %v454 = vadd.f32 %v361, %v362
          %455 = vadd.xlane.f32.xlu0 %v454
          %v456 = vpop.xlane.xlu0 %455
          %v457 = vadd.f32 %v363, %v364
          %458 = vadd.xlane.f32.xlu0 %v457
          %v459 = vpop.xlane.xlu0 %458
          %v460 = vadd.f32 %v365, %v366
          %461 = vadd.xlane.f32.xlu0 %v460
          %v462 = vpop.xlane.xlu0 %461
          %v463 = vadd.f32 %v367, %v368
          %464 = vadd.xlane.f32.xlu0 %v463
          %v465 = vpop.xlane.xlu0 %464
          %v466 = vadd.f32 %v369, %v370
          %467 = vadd.xlane.f32.xlu0 %v466
          %v468 = vpop.xlane.xlu0 %467
          %v469 = vadd.f32 %v371, %v372
          %470 = vadd.xlane.f32.xlu0 %v469
          %v471 = vpop.xlane.xlu0 %470
          %v472 = vrcp.pop 256.0
          %v473 = vmul.f32 %v378, %v472
          %v474 = vmul.f32 %v381, %v472
          %v475 = vmul.f32 %v384, %v472
          %v476 = vmul.f32 %v387, %v472
          %v477 = vmul.f32 %v390, %v472
          %v478 = vmul.f32 %v393, %v472
          %v479 = vmul.f32 %v396, %v472
          %v480 = vmul.f32 %v399, %v472
          %v481 = vmul.f32 %v402, %v472
          %v482 = vmul.f32 %v405, %v472
          %v483 = vmul.f32 %v408, %v472
          %v484 = vmul.f32 %v411, %v472
          %v485 = vmul.f32 %v414, %v472
          %v486 = vmul.f32 %v417, %v472
          %v487 = vmul.f32 %v420, %v472
          %v488 = vmul.f32 %v423, %v472
          %v489 = vmul.f32 %v426, %v472
          %v490 = vmul.f32 %v429, %v472
          %v491 = vmul.f32 %v432, %v472
          %v492 = vmul.f32 %v435, %v472
          %v493 = vmul.f32 %v438, %v472
          %v494 = vmul.f32 %v441, %v472
          %v495 = vmul.f32 %v444, %v472
          %v496 = vmul.f32 %v447, %v472
          %v497 = vmul.f32 %v450, %v472
          %v498 = vmul.f32 %v453, %v472
          %v499 = vmul.f32 %v456, %v472
          %v500 = vmul.f32 %v459, %v472
          %v501 = vmul.f32 %v462, %v472
          %v502 = vmul.f32 %v465, %v472
          %v503 = vmul.f32 %v468, %v472
          %v504 = vmul.f32 %v471, %v472
          %v505 = vmul.f32 %v309, %v309
          %v506 = vmul.f32 %v310, %v310
          %v507 = vmul.f32 %v311, %v311
          %v508 = vmul.f32 %v312, %v312
          %v509 = vmul.f32 %v313, %v313
          %v510 = vmul.f32 %v314, %v314
          %v511 = vmul.f32 %v315, %v315
          %v512 = vmul.f32 %v316, %v316
          %v513 = vmul.f32 %v317, %v317
          %v514 = vmul.f32 %v318, %v318
          %v515 = vmul.f32 %v319, %v319
          %v516 = vmul.f32 %v320, %v320
          %v517 = vmul.f32 %v321, %v321
          %v518 = vmul.f32 %v322, %v322
          %v519 = vmul.f32 %v323, %v323
          %v520 = vmul.f32 %v324, %v324
          %v521 = vmul.f32 %v325, %v325
          %v522 = vmul.f32 %v326, %v326
          %v523 = vmul.f32 %v327, %v327
          %v524 = vmul.f32 %v328, %v328
          %v525 = vmul.f32 %v329, %v329
          %v526 = vmul.f32 %v330, %v330
          %v527 = vmul.f32 %v331, %v331
          %v528 = vmul.f32 %v332, %v332
          %v529 = vmul.f32 %v333, %v333
          %v530 = vmul.f32 %v334, %v334
          %v531 = vmul.f32 %v335, %v335
          %v532 = vmul.f32 %v336, %v336
          %v533 = vmul.f32 %v337, %v337
          %v534 = vmul.f32 %v338, %v338
          %v535 = vmul.f32 %v339, %v339
          %v536 = vmul.f32 %v340, %v340
          %v537 = vmul.f32 %v341, %v341
          %v538 = vmul.f32 %v342, %v342
          %v539 = vmul.f32 %v343, %v343
          %v540 = vmul.f32 %v344, %v344
          %v541 = vmul.f32 %v345, %v345
          %v542 = vmul.f32 %v346, %v346
          %v543 = vmul.f32 %v347, %v347
          %v544 = vmul.f32 %v348, %v348
          %v545 = vmul.f32 %v349, %v349
          %v546 = vmul.f32 %v350, %v350
          %v547 = vmul.f32 %v351, %v351
          %v548 = vmul.f32 %v352, %v352
          %v549 = vmul.f32 %v353, %v353
          %v550 = vmul.f32 %v354, %v354
          %v551 = vmul.f32 %v355, %v355
          %v552 = vmul.f32 %v356, %v356
          %v553 = vmul.f32 %v357, %v357
          %v554 = vmul.f32 %v358, %v358
          %v555 = vmul.f32 %v359, %v359
          %v556 = vmul.f32 %v360, %v360
          %v557 = vmul.f32 %v361, %v361
          %v558 = vmul.f32 %v362, %v362
          %v559 = vmul.f32 %v363, %v363
          %v560 = vmul.f32 %v364, %v364
          %v561 = vmul.f32 %v365, %v365
          %v562 = vmul.f32 %v366, %v366
          %v563 = vmul.f32 %v367, %v367
          %v564 = vmul.f32 %v368, %v368
          %v565 = vmul.f32 %v369, %v369
          %v566 = vmul.f32 %v370, %v370
          %v567 = vmul.f32 %v371, %v371
          %v568 = vmul.f32 %v372, %v372
          %v569 = vadd.f32 %v505, %v506
          %570 = vadd.xlane.f32.xlu0 %v569
          %v571 = vpop.xlane.xlu0 %570
          %v572 = vadd.f32 %v507, %v508
          %573 = vadd.xlane.f32.xlu0 %v572
          %v574 = vpop.xlane.xlu0 %573
          %v575 = vadd.f32 %v509, %v510
          %576 = vadd.xlane.f32.xlu0 %v575
          %v577 = vpop.xlane.xlu0 %576
          %v578 = vadd.f32 %v511, %v512
          %579 = vadd.xlane.f32.xlu0 %v578
          %v580 = vpop.xlane.xlu0 %579
          %v581 = vadd.f32 %v513, %v514
          %582 = vadd.xlane.f32.xlu0 %v581
          %v583 = vpop.xlane.xlu0 %582
          %v584 = vadd.f32 %v515, %v516
          %585 = vadd.xlane.f32.xlu0 %v584
          %v586 = vpop.xlane.xlu0 %585
          %v587 = vadd.f32 %v517, %v518
          %588 = vadd.xlane.f32.xlu0 %v587
          %v589 = vpop.xlane.xlu0 %588
          %v590 = vadd.f32 %v519, %v520
          %591 = vadd.xlane.f32.xlu0 %v590
          %v592 = vpop.xlane.xlu0 %591
          %v593 = vadd.f32 %v521, %v522
          %594 = vadd.xlane.f32.xlu0 %v593
          %v595 = vpop.xlane.xlu0 %594
          %v596 = vadd.f32 %v523, %v524
          %597 = vadd.xlane.f32.xlu0 %v596
          %v598 = vpop.xlane.xlu0 %597
          %v599 = vadd.f32 %v525, %v526
          %600 = vadd.xlane.f32.xlu0 %v599
          %v601 = vpop.xlane.xlu0 %600
          %v602 = vadd.f32 %v527, %v528
          %603 = vadd.xlane.f32.xlu0 %v602
          %v604 = vpop.xlane.xlu0 %603
          %v605 = vadd.f32 %v529, %v530
          %606 = vadd.xlane.f32.xlu0 %v605
          %v607 = vpop.xlane.xlu0 %606
          %v608 = vadd.f32 %v531, %v532
          %609 = vadd.xlane.f32.xlu0 %v608
          %v610 = vpop.xlane.xlu0 %609
          %v611 = vadd.f32 %v533, %v534
          %612 = vadd.xlane.f32.xlu0 %v611
          %v613 = vpop.xlane.xlu0 %612
          %v614 = vadd.f32 %v535, %v536
          %615 = vadd.xlane.f32.xlu0 %v614
          %v616 = vpop.xlane.xlu0 %615
          %v617 = vadd.f32 %v537, %v538
          %618 = vadd.xlane.f32.xlu0 %v617
          %v619 = vpop.xlane.xlu0 %618
          %v620 = vadd.f32 %v539, %v540
          %621 = vadd.xlane.f32.xlu0 %v620
          %v622 = vpop.xlane.xlu0 %621
          %v623 = vadd.f32 %v541, %v542
          %624 = vadd.xlane.f32.xlu0 %v623
          %v625 = vpop.xlane.xlu0 %624
          %v626 = vadd.f32 %v543, %v544
          %627 = vadd.xlane.f32.xlu0 %v626
          %v628 = vpop.xlane.xlu0 %627
          %v629 = vadd.f32 %v545, %v546
          %630 = vadd.xlane.f32.xlu0 %v629
          %v631 = vpop.xlane.xlu0 %630
          %v632 = vadd.f32 %v547, %v548
          %633 = vadd.xlane.f32.xlu0 %v632
          %v634 = vpop.xlane.xlu0 %633
          %v635 = vadd.f32 %v549, %v550
          %636 = vadd.xlane.f32.xlu0 %v635
          %v637 = vpop.xlane.xlu0 %636
          %v638 = vadd.f32 %v551, %v552
          %639 = vadd.xlane.f32.xlu0 %v638
          %v640 = vpop.xlane.xlu0 %639
          %v641 = vadd.f32 %v553, %v554
          %642 = vadd.xlane.f32.xlu0 %v641
          %v643 = vpop.xlane.xlu0 %642
          %v644 = vadd.f32 %v555, %v556
          %645 = vadd.xlane.f32.xlu0 %v644
          %v646 = vpop.xlane.xlu0 %645
          %v647 = vadd.f32 %v557, %v558
          %648 = vadd.xlane.f32.xlu0 %v647
          %v649 = vpop.xlane.xlu0 %648
          %v650 = vadd.f32 %v559, %v560
          %651 = vadd.xlane.f32.xlu0 %v650
          %v652 = vpop.xlane.xlu0 %651
          %v653 = vadd.f32 %v561, %v562
          %654 = vadd.xlane.f32.xlu0 %v653
          %v655 = vpop.xlane.xlu0 %654
          %v656 = vadd.f32 %v563, %v564
          %657 = vadd.xlane.f32.xlu0 %v656
          %v658 = vpop.xlane.xlu0 %657
          %v659 = vadd.f32 %v565, %v566
          %660 = vadd.xlane.f32.xlu0 %v659
          %v661 = vpop.xlane.xlu0 %660
          %v662 = vadd.f32 %v567, %v568
          %663 = vadd.xlane.f32.xlu0 %v662
          %v664 = vpop.xlane.xlu0 %663
          %v665 = vmul.f32 %v571, %v472
          %v666 = vmul.f32 %v574, %v472
          %v667 = vmul.f32 %v577, %v472
          %v668 = vmul.f32 %v580, %v472
          %v669 = vmul.f32 %v583, %v472
          %v670 = vmul.f32 %v586, %v472
          %v671 = vmul.f32 %v589, %v472
          %v672 = vmul.f32 %v592, %v472
          %v673 = vmul.f32 %v595, %v472
          %v674 = vmul.f32 %v598, %v472
          %v675 = vmul.f32 %v601, %v472
          %v676 = vmul.f32 %v604, %v472
          %v677 = vmul.f32 %v607, %v472
          %v678 = vmul.f32 %v610, %v472
          %v679 = vmul.f32 %v613, %v472
          %v680 = vmul.f32 %v616, %v472
          %v681 = vmul.f32 %v619, %v472
          %v682 = vmul.f32 %v622, %v472
          %v683 = vmul.f32 %v625, %v472
          %v684 = vmul.f32 %v628, %v472
          %v685 = vmul.f32 %v631, %v472
          %v686 = vmul.f32 %v634, %v472
          %v687 = vmul.f32 %v637, %v472
          %v688 = vmul.f32 %v640, %v472
          %v689 = vmul.f32 %v643, %v472
          %v690 = vmul.f32 %v646, %v472
          %v691 = vmul.f32 %v649, %v472
          %v692 = vmul.f32 %v652, %v472
          %v693 = vmul.f32 %v655, %v472
          %v694 = vmul.f32 %v658, %v472
          %v695 = vmul.f32 %v661, %v472
          %v696 = vmul.f32 %v664, %v472
          %v697 = vmul.f32 %v473, %v473
          %v698 = vmul.f32 %v474, %v474
          %v699 = vmul.f32 %v475, %v475
          %v700 = vmul.f32 %v476, %v476
          %v701 = vmul.f32 %v477, %v477
          %v702 = vmul.f32 %v478, %v478
          %v703 = vmul.f32 %v479, %v479
          %v704 = vmul.f32 %v480, %v480
          %v705 = vmul.f32 %v481, %v481
          %v706 = vmul.f32 %v482, %v482
          %v707 = vmul.f32 %v483, %v483
          %v708 = vmul.f32 %v484, %v484
          %v709 = vmul.f32 %v485, %v485
          %v710 = vmul.f32 %v486, %v486
          %v711 = vmul.f32 %v487, %v487
          %v712 = vmul.f32 %v488, %v488
          %v713 = vmul.f32 %v489, %v489
          %v714 = vmul.f32 %v490, %v490
          %v715 = vmul.f32 %v491, %v491
          %v716 = vmul.f32 %v492, %v492
          %v717 = vmul.f32 %v493, %v493
          %v718 = vmul.f32 %v494, %v494
          %v719 = vmul.f32 %v495, %v495
          %v720 = vmul.f32 %v496, %v496
          %v721 = vmul.f32 %v497, %v497
          %v722 = vmul.f32 %v498, %v498
          %v723 = vmul.f32 %v499, %v499
          %v724 = vmul.f32 %v500, %v500
          %v725 = vmul.f32 %v501, %v501
          %v726 = vmul.f32 %v502, %v502
          %v727 = vmul.f32 %v503, %v503
          %v728 = vmul.f32 %v504, %v504
          %v729 = vsub.f32 %v665, %v697
          %v730 = vsub.f32 %v666, %v698
          %v731 = vsub.f32 %v667, %v699
          %v732 = vsub.f32 %v668, %v700
          %v733 = vsub.f32 %v669, %v701
          %v734 = vsub.f32 %v670, %v702
          %v735 = vsub.f32 %v671, %v703
          %v736 = vsub.f32 %v672, %v704
          %v737 = vsub.f32 %v673, %v705
          %v738 = vsub.f32 %v674, %v706
          %v739 = vsub.f32 %v675, %v707
          %v740 = vsub.f32 %v676, %v708
          %v741 = vsub.f32 %v677, %v709
          %v742 = vsub.f32 %v678, %v710
          %v743 = vsub.f32 %v679, %v711
          %v744 = vsub.f32 %v680, %v712
          %v745 = vsub.f32 %v681, %v713
          %v746 = vsub.f32 %v682, %v714
          %v747 = vsub.f32 %v683, %v715
          %v748 = vsub.f32 %v684, %v716
          %v749 = vsub.f32 %v685, %v717
          %v750 = vsub.f32 %v686, %v718
          %v751 = vsub.f32 %v687, %v719
          %v752 = vsub.f32 %v688, %v720
          %v753 = vsub.f32 %v689, %v721
          %v754 = vsub.f32 %v690, %v722
          %v755 = vsub.f32 %v691, %v723
          %v756 = vsub.f32 %v692, %v724
          %v757 = vsub.f32 %v693, %v725
          %v758 = vsub.f32 %v694, %v726
          %v759 = vsub.f32 %v695, %v727
          %v760 = vsub.f32 %v696, %v728
          %v761 = vsub.f32 %v309, %v473
          %v762 = vsub.f32 %v310, %v473
          %v763 = vsub.f32 %v311, %v474
          %v764 = vsub.f32 %v312, %v474
          %v765 = vsub.f32 %v313, %v475
          %v766 = vsub.f32 %v314, %v475
          %v767 = vsub.f32 %v315, %v476
          %v768 = vsub.f32 %v316, %v476
          %v769 = vsub.f32 %v317, %v477
          %v770 = vsub.f32 %v318, %v477
          %v771 = vsub.f32 %v319, %v478
          %v772 = vsub.f32 %v320, %v478
          %v773 = vsub.f32 %v321, %v479
          %v774 = vsub.f32 %v322, %v479
          %v775 = vsub.f32 %v323, %v480
          %v776 = vsub.f32 %v324, %v480
          %v777 = vsub.f32 %v325, %v481
          %v778 = vsub.f32 %v326, %v481
          %v779 = vsub.f32 %v327, %v482
          %v780 = vsub.f32 %v328, %v482
          %v781 = vsub.f32 %v329, %v483
          %v782 = vsub.f32 %v330, %v483
          %v783 = vsub.f32 %v331, %v484
          %v784 = vsub.f32 %v332, %v484
          %v785 = vsub.f32 %v333, %v485
          %v786 = vsub.f32 %v334, %v485
          %v787 = vsub.f32 %v335, %v486
          %v788 = vsub.f32 %v336, %v486
          %v789 = vsub.f32 %v337, %v487
          %v790 = vsub.f32 %v338, %v487
          %v791 = vsub.f32 %v339, %v488
          %v792 = vsub.f32 %v340, %v488
          %v793 = vsub.f32 %v341, %v489
          %v794 = vsub.f32 %v342, %v489
          %v795 = vsub.f32 %v343, %v490
          %v796 = vsub.f32 %v344, %v490
          %v797 = vsub.f32 %v345, %v491
          %v798 = vsub.f32 %v346, %v491
          %v799 = vsub.f32 %v347, %v492
          %v800 = vsub.f32 %v348, %v492
          %v801 = vsub.f32 %v349, %v493
          %v802 = vsub.f32 %v350, %v493
          %v803 = vsub.f32 %v351, %v494
          %v804 = vsub.f32 %v352, %v494
          %v805 = vsub.f32 %v353, %v495
          %v806 = vsub.f32 %v354, %v495
          %v807 = vsub.f32 %v355, %v496
          %v808 = vsub.f32 %v356, %v496
          %v809 = vsub.f32 %v357, %v497
          %v810 = vsub.f32 %v358, %v497
          %v811 = vsub.f32 %v359, %v498
          %v812 = vsub.f32 %v360, %v498
          %v813 = vsub.f32 %v361, %v499
          %v814 = vsub.f32 %v362, %v499
          %v815 = vsub.f32 %v363, %v500
          %v816 = vsub.f32 %v364, %v500
          %v817 = vsub.f32 %v365, %v501
          %v818 = vsub.f32 %v366, %v501
          %v819 = vsub.f32 %v367, %v502
          %v820 = vsub.f32 %v368, %v502
          %v821 = vsub.f32 %v369, %v503
          %v822 = vsub.f32 %v370, %v503
          %v823 = vsub.f32 %v371, %v504
          %v824 = vsub.f32 %v372, %v504
          %v825 = vadd.f32 %v729, 1e-05
          %v826 = vadd.f32 %v730, 1e-05
          %v827 = vadd.f32 %v731, 1e-05
          %v828 = vadd.f32 %v732, 1e-05
          %v829 = vadd.f32 %v733, 1e-05
          %v830 = vadd.f32 %v734, 1e-05
          %v831 = vadd.f32 %v735, 1e-05
          %v832 = vadd.f32 %v736, 1e-05
          %v833 = vadd.f32 %v737, 1e-05
          %v834 = vadd.f32 %v738, 1e-05
          %v835 = vadd.f32 %v739, 1e-05
          %v836 = vadd.f32 %v740, 1e-05
          %v837 = vadd.f32 %v741, 1e-05
          %v838 = vadd.f32 %v742, 1e-05
          %v839 = vadd.f32 %v743, 1e-05
          %v840 = vadd.f32 %v744, 1e-05
          %v841 = vadd.f32 %v745, 1e-05
          %v842 = vadd.f32 %v746, 1e-05
          %v843 = vadd.f32 %v747, 1e-05
          %v844 = vadd.f32 %v748, 1e-05
          %v845 = vadd.f32 %v749, 1e-05
          %v846 = vadd.f32 %v750, 1e-05
          %v847 = vadd.f32 %v751, 1e-05
          %v848 = vadd.f32 %v752, 1e-05
          %v849 = vadd.f32 %v753, 1e-05
          %v850 = vadd.f32 %v754, 1e-05
          %v851 = vadd.f32 %v755, 1e-05
          %v852 = vadd.f32 %v756, 1e-05
          %v853 = vadd.f32 %v757, 1e-05
          %v854 = vadd.f32 %v758, 1e-05
          %v855 = vadd.f32 %v759, 1e-05
          %v856 = vadd.f32 %v760, 1e-05
          %v857 = vrsqrt.pop %v825
          %v858 = vrsqrt.pop %v826
          %v859 = vrsqrt.pop %v827
          %v860 = vrsqrt.pop %v828
          %v861 = vrsqrt.pop %v829
          %v862 = vrsqrt.pop %v830
          %v863 = vrsqrt.pop %v831
          %v864 = vrsqrt.pop %v832
          %v865 = vrsqrt.pop %v833
          %v866 = vrsqrt.pop %v834
          %v867 = vrsqrt.pop %v835
          %v868 = vrsqrt.pop %v836
          %v869 = vrsqrt.pop %v837
          %v870 = vrsqrt.pop %v838
          %v871 = vrsqrt.pop %v839
          %v872 = vrsqrt.pop %v840
          %v873 = vrsqrt.pop %v841
          %v874 = vrsqrt.pop %v842
          %v875 = vrsqrt.pop %v843
          %v876 = vrsqrt.pop %v844
          %v877 = vrsqrt.pop %v845
          %v878 = vrsqrt.pop %v846
          %v879 = vrsqrt.pop %v847
          %v880 = vrsqrt.pop %v848
          %v881 = vrsqrt.pop %v849
          %v882 = vrsqrt.pop %v850
          %v883 = vrsqrt.pop %v851
          %v884 = vrsqrt.pop %v852
          %v885 = vrsqrt.pop %v853
          %v886 = vrsqrt.pop %v854
          %v887 = vrsqrt.pop %v855
          %v888 = vrsqrt.pop %v856
          %v889 = vmul.f32 %v761, %v857
          %v890 = vmul.f32 %v762, %v857
          %v891 = vmul.f32 %v763, %v858
          %v892 = vmul.f32 %v764, %v858
          %v893 = vmul.f32 %v765, %v859
          %v894 = vmul.f32 %v766, %v859
          %v895 = vmul.f32 %v767, %v860
          %v896 = vmul.f32 %v768, %v860
          %v897 = vmul.f32 %v769, %v861
          %v898 = vmul.f32 %v770, %v861
          %v899 = vmul.f32 %v771, %v862
          %v900 = vmul.f32 %v772, %v862
          %v901 = vmul.f32 %v773, %v863
          %v902 = vmul.f32 %v774, %v863
          %v903 = vmul.f32 %v775, %v864
          %v904 = vmul.f32 %v776, %v864
          %v905 = vmul.f32 %v777, %v865
          %v906 = vmul.f32 %v778, %v865
          %v907 = vmul.f32 %v779, %v866
          %v908 = vmul.f32 %v780, %v866
          %v909 = vmul.f32 %v781, %v867
          %v910 = vmul.f32 %v782, %v867
          %v911 = vmul.f32 %v783, %v868
          %v912 = vmul.f32 %v784, %v868
          %v913 = vmul.f32 %v785, %v869
          %v914 = vmul.f32 %v786, %v869
          %v915 = vmul.f32 %v787, %v870
          %v916 = vmul.f32 %v788, %v870
          %v917 = vmul.f32 %v789, %v871
          %v918 = vmul.f32 %v790, %v871
          %v919 = vmul.f32 %v791, %v872
          %v920 = vmul.f32 %v792, %v872
          %v921 = vmul.f32 %v793, %v873
          %v922 = vmul.f32 %v794, %v873
          %v923 = vmul.f32 %v795, %v874
          %v924 = vmul.f32 %v796, %v874
          %v925 = vmul.f32 %v797, %v875
          %v926 = vmul.f32 %v798, %v875
          %v927 = vmul.f32 %v799, %v876
          %v928 = vmul.f32 %v800, %v876
          %v929 = vmul.f32 %v801, %v877
          %v930 = vmul.f32 %v802, %v877
          %v931 = vmul.f32 %v803, %v878
          %v932 = vmul.f32 %v804, %v878
          %v933 = vmul.f32 %v805, %v879
          %v934 = vmul.f32 %v806, %v879
          %v935 = vmul.f32 %v807, %v880
          %v936 = vmul.f32 %v808, %v880
          %v937 = vmul.f32 %v809, %v881
          %v938 = vmul.f32 %v810, %v881
          %v939 = vmul.f32 %v811, %v882
          %v940 = vmul.f32 %v812, %v882
          %v941 = vmul.f32 %v813, %v883
          %v942 = vmul.f32 %v814, %v883
          %v943 = vmul.f32 %v815, %v884
          %v944 = vmul.f32 %v816, %v884
          %v945 = vmul.f32 %v817, %v885
          %v946 = vmul.f32 %v818, %v885
          %v947 = vmul.f32 %v819, %v886
          %v948 = vmul.f32 %v820, %v886
          %v949 = vmul.f32 %v821, %v887
          %v950 = vmul.f32 %v822, %v887
          %v951 = vmul.f32 %v823, %v888
          %v952 = vmul.f32 %v824, %v888
          %v954 = vlaneseq
          %v955 = vshrl.u32 %v954, 7
          %v956 = vsub.s32 0, %v955
          %v957 = vrot.slane %v373, %v956
          %v958 = vlaneseq
          %v959 = vshrl.u32 %v958, 7
          %v960 = vsub.s32 1, %v959
          %v961 = vrot.slane %v373, %v960
          %v964 = vmul.f32 %v889, %v957
          %v965 = vmul.f32 %v890, %v961
          %v966 = vmul.f32 %v891, %v957
          %v967 = vmul.f32 %v892, %v961
          %v968 = vmul.f32 %v893, %v957
          %v969 = vmul.f32 %v894, %v961
          %v970 = vmul.f32 %v895, %v957
          %v971 = vmul.f32 %v896, %v961
          %v972 = vmul.f32 %v897, %v957
          %v973 = vmul.f32 %v898, %v961
          %v974 = vmul.f32 %v899, %v957
          %v975 = vmul.f32 %v900, %v961
          %v976 = vmul.f32 %v901, %v957
          %v977 = vmul.f32 %v902, %v961
          %v978 = vmul.f32 %v903, %v957
          %v979 = vmul.f32 %v904, %v961
          %v980 = vmul.f32 %v905, %v957
          %v981 = vmul.f32 %v906, %v961
          %v982 = vmul.f32 %v907, %v957
          %v983 = vmul.f32 %v908, %v961
          %v984 = vmul.f32 %v909, %v957
          %v985 = vmul.f32 %v910, %v961
          %v986 = vmul.f32 %v911, %v957
          %v987 = vmul.f32 %v912, %v961
          %v988 = vmul.f32 %v913, %v957
          %v989 = vmul.f32 %v914, %v961
          %v990 = vmul.f32 %v915, %v957
          %v991 = vmul.f32 %v916, %v961
          %v992 = vmul.f32 %v917, %v957
          %v993 = vmul.f32 %v918, %v961
          %v994 = vmul.f32 %v919, %v957
          %v995 = vmul.f32 %v920, %v961
          %v996 = vmul.f32 %v921, %v957
          %v997 = vmul.f32 %v922, %v961
          %v998 = vmul.f32 %v923, %v957
          %v999 = vmul.f32 %v924, %v961
          %v1000 = vmul.f32 %v925, %v957
          %v1001 = vmul.f32 %v926, %v961
          %v1002 = vmul.f32 %v927, %v957
          %v1003 = vmul.f32 %v928, %v961
          %v1004 = vmul.f32 %v929, %v957
          %v1005 = vmul.f32 %v930, %v961
          %v1006 = vmul.f32 %v931, %v957
          %v1007 = vmul.f32 %v932, %v961
          %v1008 = vmul.f32 %v933, %v957
          %v1009 = vmul.f32 %v934, %v961
          %v1010 = vmul.f32 %v935, %v957
          %v1011 = vmul.f32 %v936, %v961
          %v1012 = vmul.f32 %v937, %v957
          %v1013 = vmul.f32 %v938, %v961
          %v1014 = vmul.f32 %v939, %v957
          %v1015 = vmul.f32 %v940, %v961
          %v1016 = vmul.f32 %v941, %v957
          %v1017 = vmul.f32 %v942, %v961
          %v1018 = vmul.f32 %v943, %v957
          %v1019 = vmul.f32 %v944, %v961
          %v1020 = vmul.f32 %v945, %v957
          %v1021 = vmul.f32 %v946, %v961
          %v1022 = vmul.f32 %v947, %v957
          %v1023 = vmul.f32 %v948, %v961
          %v1024 = vmul.f32 %v949, %v957
          %v1025 = vmul.f32 %v950, %v961
          %v1026 = vmul.f32 %v951, %v957
          %v1027 = vmul.f32 %v952, %v961
          %v1029 = vlaneseq
          %v1030 = vshrl.u32 %v1029, 7
          %v1031 = vsub.s32 0, %v1030
          %v1032 = vrot.slane %v375, %v1031
          %v1033 = vlaneseq
          %v1034 = vshrl.u32 %v1033, 7
          %v1035 = vsub.s32 1, %v1034
          %v1036 = vrot.slane %v375, %v1035
          %v1039 = vadd.f32 %v964, %v1032
          %v1040 = vadd.f32 %v965, %v1036
          %v1041 = vadd.f32 %v966, %v1032
          %v1042 = vadd.f32 %v967, %v1036
          %v1043 = vadd.f32 %v968, %v1032
          %v1044 = vadd.f32 %v969, %v1036
          %v1045 = vadd.f32 %v970, %v1032
          %v1046 = vadd.f32 %v971, %v1036
          %v1047 = vadd.f32 %v972, %v1032
          %v1048 = vadd.f32 %v973, %v1036
          %v1049 = vadd.f32 %v974, %v1032
          %v1050 = vadd.f32 %v975, %v1036
          %v1051 = vadd.f32 %v976, %v1032
          %v1052 = vadd.f32 %v977, %v1036
          %v1053 = vadd.f32 %v978, %v1032
          %v1054 = vadd.f32 %v979, %v1036
          %v1055 = vadd.f32 %v980, %v1032
          %v1056 = vadd.f32 %v981, %v1036
          %v1057 = vadd.f32 %v982, %v1032
          %v1058 = vadd.f32 %v983, %v1036
          %v1059 = vadd.f32 %v984, %v1032
          %v1060 = vadd.f32 %v985, %v1036
          %v1061 = vadd.f32 %v986, %v1032
          %v1062 = vadd.f32 %v987, %v1036
          %v1063 = vadd.f32 %v988, %v1032
          %v1064 = vadd.f32 %v989, %v1036
          %v1065 = vadd.f32 %v990, %v1032
          %v1066 = vadd.f32 %v991, %v1036
          %v1067 = vadd.f32 %v992, %v1032
          %v1068 = vadd.f32 %v993, %v1036
          %v1069 = vadd.f32 %v994, %v1032
          %v1070 = vadd.f32 %v995, %v1036
          %v1071 = vadd.f32 %v996, %v1032
          %v1072 = vadd.f32 %v997, %v1036
          %v1073 = vadd.f32 %v998, %v1032
          %v1074 = vadd.f32 %v999, %v1036
          %v1075 = vadd.f32 %v1000, %v1032
          %v1076 = vadd.f32 %v1001, %v1036
          %v1077 = vadd.f32 %v1002, %v1032
          %v1078 = vadd.f32 %v1003, %v1036
          %v1079 = vadd.f32 %v1004, %v1032
          %v1080 = vadd.f32 %v1005, %v1036
          %v1081 = vadd.f32 %v1006, %v1032
          %v1082 = vadd.f32 %v1007, %v1036
          %v1083 = vadd.f32 %v1008, %v1032
          %v1084 = vadd.f32 %v1009, %v1036
          %v1085 = vadd.f32 %v1010, %v1032
          %v1086 = vadd.f32 %v1011, %v1036
          %v1087 = vadd.f32 %v1012, %v1032
          %v1088 = vadd.f32 %v1013, %v1036
          %v1089 = vadd.f32 %v1014, %v1032
          %v1090 = vadd.f32 %v1015, %v1036
          %v1091 = vadd.f32 %v1016, %v1032
          %v1092 = vadd.f32 %v1017, %v1036
          %v1093 = vadd.f32 %v1018, %v1032
          %v1094 = vadd.f32 %v1019, %v1036
          %v1095 = vadd.f32 %v1020, %v1032
          %v1096 = vadd.f32 %v1021, %v1036
          %v1097 = vadd.f32 %v1022, %v1032
          %v1098 = vadd.f32 %v1023, %v1036
          %v1099 = vadd.f32 %v1024, %v1032
          %v1100 = vadd.f32 %v1025, %v1036
          %v1101 = vadd.f32 %v1026, %v1032
          %v1102 = vadd.f32 %v1027, %v1036
          %v1103 = vpack.c.bf16 %v1041, %v1039
          %v1104 = vpack.c.bf16 %v1042, %v1040
          %v1105 = vpack.c.bf16 %v1045, %v1043
          %v1106 = vpack.c.bf16 %v1046, %v1044
          %v1107 = vpack.c.bf16 %v1049, %v1047
          %v1108 = vpack.c.bf16 %v1050, %v1048
          %v1109 = vpack.c.bf16 %v1053, %v1051
          %v1110 = vpack.c.bf16 %v1054, %v1052
          %v1111 = vpack.c.bf16 %v1057, %v1055
          %v1112 = vpack.c.bf16 %v1058, %v1056
          %v1113 = vpack.c.bf16 %v1061, %v1059
          %v1114 = vpack.c.bf16 %v1062, %v1060
          %v1115 = vpack.c.bf16 %v1065, %v1063
          %v1116 = vpack.c.bf16 %v1066, %v1064
          %v1117 = vpack.c.bf16 %v1069, %v1067
          %v1118 = vpack.c.bf16 %v1070, %v1068
          %v1119 = vpack.c.bf16 %v1073, %v1071
          %v1120 = vpack.c.bf16 %v1074, %v1072
          %v1121 = vpack.c.bf16 %v1077, %v1075
          %v1122 = vpack.c.bf16 %v1078, %v1076
          %v1123 = vpack.c.bf16 %v1081, %v1079
          %v1124 = vpack.c.bf16 %v1082, %v1080
          %v1125 = vpack.c.bf16 %v1085, %v1083
          %v1126 = vpack.c.bf16 %v1086, %v1084
          %v1127 = vpack.c.bf16 %v1089, %v1087
          %v1128 = vpack.c.bf16 %v1090, %v1088
          %v1129 = vpack.c.bf16 %v1093, %v1091
          %v1130 = vpack.c.bf16 %v1094, %v1092
          %v1131 = vpack.c.bf16 %v1097, %v1095
          %v1132 = vpack.c.bf16 %v1098, %v1096
          %v1133 = vpack.c.bf16 %v1101, %v1099
          %v1134 = vpack.c.bf16 %v1102, %v1100
          %v1167 = vunpack.c.l.b16 %v1103
          %v1168 = vunpack.c.l.b16 %v1104
          %v1169 = vunpack.c.h.b16 %v1103
          %v1170 = vunpack.c.h.b16 %v1104
          %v1171 = vunpack.c.l.b16 %v1105
          %v1172 = vunpack.c.l.b16 %v1106
          %v1173 = vunpack.c.h.b16 %v1105
          %v1174 = vunpack.c.h.b16 %v1106
          %v1175 = vunpack.c.l.b16 %v1107
          %v1176 = vunpack.c.l.b16 %v1108
          %v1177 = vunpack.c.h.b16 %v1107
          %v1178 = vunpack.c.h.b16 %v1108
          %v1179 = vunpack.c.l.b16 %v1109
          %v1180 = vunpack.c.l.b16 %v1110
          %v1181 = vunpack.c.h.b16 %v1109
          %v1182 = vunpack.c.h.b16 %v1110
          %v1183 = vunpack.c.l.b16 %v1111
          %v1184 = vunpack.c.l.b16 %v1112
          %v1185 = vunpack.c.h.b16 %v1111
          %v1186 = vunpack.c.h.b16 %v1112
          %v1187 = vunpack.c.l.b16 %v1113
          %v1188 = vunpack.c.l.b16 %v1114
          %v1189 = vunpack.c.h.b16 %v1113
          %v1190 = vunpack.c.h.b16 %v1114
          %v1191 = vunpack.c.l.b16 %v1115
          %v1192 = vunpack.c.l.b16 %v1116
          %v1193 = vunpack.c.h.b16 %v1115
          %v1194 = vunpack.c.h.b16 %v1116
          %v1195 = vunpack.c.l.b16 %v1117
          %v1196 = vunpack.c.l.b16 %v1118
          %v1197 = vunpack.c.h.b16 %v1117
          %v1198 = vunpack.c.h.b16 %v1118
          %v1199 = vunpack.c.l.b16 %v1119
          %v1200 = vunpack.c.l.b16 %v1120
          %v1201 = vunpack.c.h.b16 %v1119
          %v1202 = vunpack.c.h.b16 %v1120
          %v1203 = vunpack.c.l.b16 %v1121
          %v1204 = vunpack.c.l.b16 %v1122
          %v1205 = vunpack.c.h.b16 %v1121
          %v1206 = vunpack.c.h.b16 %v1122
          %v1207 = vunpack.c.l.b16 %v1123
          %v1208 = vunpack.c.l.b16 %v1124
          %v1209 = vunpack.c.h.b16 %v1123
          %v1210 = vunpack.c.h.b16 %v1124
          %v1211 = vunpack.c.l.b16 %v1125
          %v1212 = vunpack.c.l.b16 %v1126
          %v1213 = vunpack.c.h.b16 %v1125
          %v1214 = vunpack.c.h.b16 %v1126
          %v1215 = vunpack.c.l.b16 %v1127
          %v1216 = vunpack.c.l.b16 %v1128
          %v1217 = vunpack.c.h.b16 %v1127
          %v1218 = vunpack.c.h.b16 %v1128
          %v1219 = vunpack.c.l.b16 %v1129
          %v1220 = vunpack.c.l.b16 %v1130
          %v1221 = vunpack.c.h.b16 %v1129
          %v1222 = vunpack.c.h.b16 %v1130
          %v1223 = vunpack.c.l.b16 %v1131
          %v1224 = vunpack.c.l.b16 %v1132
          %v1225 = vunpack.c.h.b16 %v1131
          %v1226 = vunpack.c.h.b16 %v1132
          %v1227 = vunpack.c.l.b16 %v1133
          %v1228 = vunpack.c.l.b16 %v1134
          %v1229 = vunpack.c.h.b16 %v1133
          %v1230 = vunpack.c.h.b16 %v1134
          %v1231 = vpack.c.b16 %v1168, %v1167
          %v1232 = vpack.c.b16 %v1170, %v1169
          %v1233 = vpack.c.b16 %v1172, %v1171
          %v1234 = vpack.c.b16 %v1174, %v1173
          %v1235 = vpack.c.b16 %v1176, %v1175
          %v1236 = vpack.c.b16 %v1178, %v1177
          %v1237 = vpack.c.b16 %v1180, %v1179
          %v1238 = vpack.c.b16 %v1182, %v1181
          %v1239 = vpack.c.b16 %v1184, %v1183
          %v1240 = vpack.c.b16 %v1186, %v1185
          %v1241 = vpack.c.b16 %v1188, %v1187
          %v1242 = vpack.c.b16 %v1190, %v1189
          %v1243 = vpack.c.b16 %v1192, %v1191
          %v1244 = vpack.c.b16 %v1194, %v1193
          %v1245 = vpack.c.b16 %v1196, %v1195
          %v1246 = vpack.c.b16 %v1198, %v1197
          %v1247 = vpack.c.b16 %v1200, %v1199
          %v1248 = vpack.c.b16 %v1202, %v1201
          %v1249 = vpack.c.b16 %v1204, %v1203
          %v1250 = vpack.c.b16 %v1206, %v1205
          %v1251 = vpack.c.b16 %v1208, %v1207
          %v1252 = vpack.c.b16 %v1210, %v1209
          %v1253 = vpack.c.b16 %v1212, %v1211
          %v1254 = vpack.c.b16 %v1214, %v1213
          %v1255 = vpack.c.b16 %v1216, %v1215
          %v1256 = vpack.c.b16 %v1218, %v1217
          %v1257 = vpack.c.b16 %v1220, %v1219
          %v1258 = vpack.c.b16 %v1222, %v1221
          %v1259 = vpack.c.b16 %v1224, %v1223
          %v1260 = vpack.c.b16 %v1226, %v1225
          %v1261 = vpack.c.b16 %v1228, %v1227
          %v1262 = vpack.c.b16 %v1230, %v1229
          %1295 = vst [vmem:[#allocation2] sm:$0xff] %v1231
          %1296 = vst [vmem:[#allocation2 + $0x8] sm:$0xff] %v1232
          %1297 = vst [vmem:[#allocation2 + $0x10] sm:$0xff] %v1233
          %1298 = vst [vmem:[#allocation2 + $0x18] sm:$0xff] %v1234
          %1299 = vst [vmem:[#allocation2 + $0x20] sm:$0xff] %v1235
          %1300 = vst [vmem:[#allocation2 + $0x28] sm:$0xff] %v1236
          %1301 = vst [vmem:[#allocation2 + $0x30] sm:$0xff] %v1237
          %1302 = vst [vmem:[#allocation2 + $0x38] sm:$0xff] %v1238
          %1303 = vst [vmem:[#allocation2 + $0x40] sm:$0xff] %v1239
          %1304 = vst [vmem:[#allocation2 + $0x48] sm:$0xff] %v1240
          %1305 = vst [vmem:[#allocation2 + $0x50] sm:$0xff] %v1241
          %1306 = vst [vmem:[#allocation2 + $0x58] sm:$0xff] %v1242
          %1307 = vst [vmem:[#allocation2 + $0x60] sm:$0xff] %v1243
          %1308 = vst [vmem:[#allocation2 + $0x68] sm:$0xff] %v1244
          %1309 = vst [vmem:[#allocation2 + $0x70] sm:$0xff] %v1245
          %1310 = vst [vmem:[#allocation2 + $0x78] sm:$0xff] %v1246
          %1311 = vst [vmem:[#allocation2 + $0x80] sm:$0xff] %v1247
          %1312 = vst [vmem:[#allocation2 + $0x88] sm:$0xff] %v1248
          %1313 = vst [vmem:[#allocation2 + $0x90] sm:$0xff] %v1249
          %1314 = vst [vmem:[#allocation2 + $0x98] sm:$0xff] %v1250
          %1315 = vst [vmem:[#allocation2 + $0xa0] sm:$0xff] %v1251
          %1316 = vst [vmem:[#allocation2 + $0xa8] sm:$0xff] %v1252
          %1317 = vst [vmem:[#allocation2 + $0xb0] sm:$0xff] %v1253
          %1318 = vst [vmem:[#allocation2 + $0xb8] sm:$0xff] %v1254
          %1319 = vst [vmem:[#allocation2 + $0xc0] sm:$0xff] %v1255
          %1320 = vst [vmem:[#allocation2 + $0xc8] sm:$0xff] %v1256
          %1321 = vst [vmem:[#allocation2 + $0xd0] sm:$0xff] %v1257
          %1322 = vst [vmem:[#allocation2 + $0xd8] sm:$0xff] %v1258
          %1323 = vst [vmem:[#allocation2 + $0xe0] sm:$0xff] %v1259
          %1324 = vst [vmem:[#allocation2 + $0xe8] sm:$0xff] %v1260
          %1325 = vst [vmem:[#allocation2 + $0xf0] sm:$0xff] %v1261
          %1326 = vst [vmem:[#allocation2 + $0xf8] sm:$0xff] %v1262
        $region56: #{tpu_custom_call.1} parent=35 // pred_fallthru
          _
        %v1327 = vld [vmem:[#allocation2] sm:$0xff]
        %v1328 = vld [vmem:[#allocation2 + $0x8] sm:$0xff]
        %v1329 = vld [vmem:[#allocation2 + $0x10] sm:$0xff]
        %v1330 = vld [vmem:[#allocation2 + $0x18] sm:$0xff]
        %v1331 = vld [vmem:[#allocation2 + $0x20] sm:$0xff]
        %v1332 = vld [vmem:[#allocation2 + $0x28] sm:$0xff]
        %v1333 = vld [vmem:[#allocation2 + $0x30] sm:$0xff]
        %v1334 = vld [vmem:[#allocation2 + $0x38] sm:$0xff]
        %v1335 = vld [vmem:[#allocation2 + $0x40] sm:$0xff]
        %v1336 = vld [vmem:[#allocation2 + $0x48] sm:$0xff]
        %v1337 = vld [vmem:[#allocation2 + $0x50] sm:$0xff]
        %v1338 = vld [vmem:[#allocation2 + $0x58] sm:$0xff]
        %v1339 = vld [vmem:[#allocation2 + $0x60] sm:$0xff]
        %v1340 = vld [vmem:[#allocation2 + $0x68] sm:$0xff]
        %v1341 = vld [vmem:[#allocation2 + $0x70] sm:$0xff]
        %v1342 = vld [vmem:[#allocation2 + $0x78] sm:$0xff]
        %v1343 = vld [vmem:[#allocation2 + $0x80] sm:$0xff]
        %v1344 = vld [vmem:[#allocation2 + $0x88] sm:$0xff]
        %v1345 = vld [vmem:[#allocation2 + $0x90] sm:$0xff]
        %v1346 = vld [vmem:[#allocation2 + $0x98] sm:$0xff]
        %v1347 = vld [vmem:[#allocation2 + $0xa0] sm:$0xff]
        %v1348 = vld [vmem:[#allocation2 + $0xa8] sm:$0xff]
        %v1349 = vld [vmem:[#allocation2 + $0xb0] sm:$0xff]
        %v1350 = vld [vmem:[#allocation2 + $0xb8] sm:$0xff]
        %v1351 = vld [vmem:[#allocation2 + $0xc0] sm:$0xff]
        %v1352 = vld [vmem:[#allocation2 + $0xc8] sm:$0xff]
        %v1353 = vld [vmem:[#allocation2 + $0xd0] sm:$0xff]
        %v1354 = vld [vmem:[#allocation2 + $0xd8] sm:$0xff]
        %v1355 = vld [vmem:[#allocation2 + $0xe0] sm:$0xff]
        %v1356 = vld [vmem:[#allocation2 + $0xe8] sm:$0xff]
        %v1357 = vld [vmem:[#allocation2 + $0xf0] sm:$0xff]
        %v1358 = vld [vmem:[#allocation2 + $0xf8] sm:$0xff]
        %v1359 = vld [vmem:[%s269] sm:$0xff]
        %v1360 = vld [vmem:[%s269 + $0x8] sm:$0xf]
        %v1361 = vld [vmem:[%s269 + $0xc] sm:$0xff]
        %v1362 = vld [vmem:[%s269 + $0x14] sm:$0xf]
        %v1363 = vld [vmem:[%s269 + $0x18] sm:$0xff]
        %v1364 = vld [vmem:[%s269 + $0x20] sm:$0xf]
        %v1365 = vld [vmem:[%s269 + $0x24] sm:$0xff]
        %v1366 = vld [vmem:[%s269 + $0x2c] sm:$0xf]
        %v1367 = vld [vmem:[%s269 + $0x30] sm:$0xff]
        %v1368 = vld [vmem:[%s269 + $0x38] sm:$0xf]
        %v1369 = vld [vmem:[%s269 + $0x3c] sm:$0xff]
        %v1370 = vld [vmem:[%s269 + $0x44] sm:$0xf]
        %v1371 = vld [vmem:[%s269 + $0x48] sm:$0xff]
        %v1372 = vld [vmem:[%s269 + $0x50] sm:$0xf]
        %v1373 = vld [vmem:[%s269 + $0x54] sm:$0xff]
        %v1374 = vld [vmem:[%s269 + $0x5c] sm:$0xf]
        %v1375 = vld [vmem:[%s269 + $0x60] sm:$0xff]
        %v1376 = vld [vmem:[%s269 + $0x68] sm:$0xf]
        %v1377 = vld [vmem:[%s269 + $0x6c] sm:$0xff]
        %v1378 = vld [vmem:[%s269 + $0x74] sm:$0xf]
        %v1379 = vld [vmem:[%s269 + $0x78] sm:$0xff]
        %v1380 = vld [vmem:[%s269 + $0x80] sm:$0xf]
        %v1381 = vld [vmem:[%s269 + $0x84] sm:$0xff]
        %v1382 = vld [vmem:[%s269 + $0x8c] sm:$0xf]
        %v1383 = vld [vmem:[%s269 + $0x90] sm:$0xff]
        %v1384 = vld [vmem:[%s269 + $0x98] sm:$0xf]
        %v1385 = vld [vmem:[%s269 + $0x9c] sm:$0xff]
        %v1386 = vld [vmem:[%s269 + $0xa4] sm:$0xf]
        %v1387 = vld [vmem:[%s269 + $0xa8] sm:$0xff]
        %v1388 = vld [vmem:[%s269 + $0xb0] sm:$0xf]
        %v1389 = vld [vmem:[%s269 + $0xb4] sm:$0xff]
        %v1390 = vld [vmem:[%s269 + $0xbc] sm:$0xf]
        %v1391 = vld [vmem:[%s269 + $0xc0] sm:$0xff]
        %v1392 = vld [vmem:[%s269 + $0xc8] sm:$0xf]
        %v1393 = vld [vmem:[%s269 + $0xcc] sm:$0xff]
        %v1394 = vld [vmem:[%s269 + $0xd4] sm:$0xf]
        %v1395 = vld [vmem:[%s269 + $0xd8] sm:$0xff]
        %v1396 = vld [vmem:[%s269 + $0xe0] sm:$0xf]
        %v1397 = vld [vmem:[%s269 + $0xe4] sm:$0xff]
        %v1398 = vld [vmem:[%s269 + $0xec] sm:$0xf]
        %v1399 = vld [vmem:[%s269 + $0xf0] sm:$0xff]
        %v1400 = vld [vmem:[%s269 + $0xf8] sm:$0xf]
        %v1401 = vld [vmem:[%s269 + $0xfc] sm:$0xff]
        %v1402 = vld [vmem:[%s269 + $0x104] sm:$0xf]
        %v1403 = vld [vmem:[%s269 + $0x108] sm:$0xff]
        %v1404 = vld [vmem:[%s269 + $0x110] sm:$0xf]
        %v1405 = vld [vmem:[%s269 + $0x114] sm:$0xff]
        %v1406 = vld [vmem:[%s269 + $0x11c] sm:$0xf]
        %v1407 = vld [vmem:[%s269 + $0x120] sm:$0xff]
        %v1408 = vld [vmem:[%s269 + $0x128] sm:$0xf]
        %v1409 = vld [vmem:[%s269 + $0x12c] sm:$0xff]
        %v1410 = vld [vmem:[%s269 + $0x134] sm:$0xf]
        %v1411 = vld [vmem:[%s269 + $0x138] sm:$0xff]
        %v1412 = vld [vmem:[%s269 + $0x140] sm:$0xf]
        %v1413 = vld [vmem:[%s269 + $0x144] sm:$0xff]
        %v1414 = vld [vmem:[%s269 + $0x14c] sm:$0xf]
        %v1415 = vld [vmem:[%s269 + $0x150] sm:$0xff]
        %v1416 = vld [vmem:[%s269 + $0x158] sm:$0xf]
        %v1417 = vld [vmem:[%s269 + $0x15c] sm:$0xff]
        %v1418 = vld [vmem:[%s269 + $0x164] sm:$0xf]
        %v1419 = vld [vmem:[%s269 + $0x168] sm:$0xff]
        %v1420 = vld [vmem:[%s269 + $0x170] sm:$0xf]
        %v1421 = vld [vmem:[%s269 + $0x174] sm:$0xff]
        %v1422 = vld [vmem:[%s269 + $0x17c] sm:$0xf]
        %v1423 = vld [vmem:[%s260] sm:$0x7]
        %v1425 = vlaneseq
        %v1426 = vshrl.u32 %v1425, 7
        %v1427 = vsub.s32 0, %v1426
        %v1428 = vrot.slane %v1423, %v1427
        %v1429 = vlaneseq
        %v1430 = vshrl.u32 %v1429, 7
        %v1431 = vsub.s32 1, %v1430
        %v1432 = vrot.slane %v1423, %v1431
        %v1433 = vlaneseq
        %v1434 = vshrl.u32 %v1433, 7
        %v1435 = vsub.s32 2, %v1434
        %v1436 = vrot.slane %v1423, %v1435
        %v1472 = vunpack.c.l.b16 %v1327
        %v1473 = vunpack.c.h.b16 %v1327
        %v1474 = vunpack.c.l.b16 %v1328
        %v1475 = vunpack.c.h.b16 %v1328
        %v1476 = vunpack.c.l.b16 %v1329
        %v1477 = vunpack.c.h.b16 %v1329
        %v1478 = vunpack.c.l.b16 %v1330
        %v1479 = vunpack.c.h.b16 %v1330
        %v1480 = vunpack.c.l.b16 %v1331
        %v1481 = vunpack.c.h.b16 %v1331
        %v1482 = vunpack.c.l.b16 %v1332
        %v1483 = vunpack.c.h.b16 %v1332
        %v1484 = vunpack.c.l.b16 %v1333
        %v1485 = vunpack.c.h.b16 %v1333
        %v1486 = vunpack.c.l.b16 %v1334
        %v1487 = vunpack.c.h.b16 %v1334
        %v1488 = vunpack.c.l.b16 %v1335
        %v1489 = vunpack.c.h.b16 %v1335
        %v1490 = vunpack.c.l.b16 %v1336
        %v1491 = vunpack.c.h.b16 %v1336
        %v1492 = vunpack.c.l.b16 %v1337
        %v1493 = vunpack.c.h.b16 %v1337
        %v1494 = vunpack.c.l.b16 %v1338
        %v1495 = vunpack.c.h.b16 %v1338
        %v1496 = vunpack.c.l.b16 %v1339
        %v1497 = vunpack.c.h.b16 %v1339
        %v1498 = vunpack.c.l.b16 %v1340
        %v1499 = vunpack.c.h.b16 %v1340
        %v1500 = vunpack.c.l.b16 %v1341
        %v1501 = vunpack.c.h.b16 %v1341
        %v1502 = vunpack.c.l.b16 %v1342
        %v1503 = vunpack.c.h.b16 %v1342
        %v1504 = vunpack.c.l.b16 %v1343
        %v1505 = vunpack.c.h.b16 %v1343
        %v1506 = vunpack.c.l.b16 %v1344
        %v1507 = vunpack.c.h.b16 %v1344
        %v1508 = vunpack.c.l.b16 %v1345
        %v1509 = vunpack.c.h.b16 %v1345
        %v1510 = vunpack.c.l.b16 %v1346
        %v1511 = vunpack.c.h.b16 %v1346
        %v1512 = vunpack.c.l.b16 %v1347
        %v1513 = vunpack.c.h.b16 %v1347
        %v1514 = vunpack.c.l.b16 %v1348
        %v1515 = vunpack.c.h.b16 %v1348
        %v1516 = vunpack.c.l.b16 %v1349
        %v1517 = vunpack.c.h.b16 %v1349
        %v1518 = vunpack.c.l.b16 %v1350
        %v1519 = vunpack.c.h.b16 %v1350
        %v1520 = vunpack.c.l.b16 %v1351
        %v1521 = vunpack.c.h.b16 %v1351
        %v1522 = vunpack.c.l.b16 %v1352
        %v1523 = vunpack.c.h.b16 %v1352
        %v1524 = vunpack.c.l.b16 %v1353
        %v1525 = vunpack.c.h.b16 %v1353
        %v1526 = vunpack.c.l.b16 %v1354
        %v1527 = vunpack.c.h.b16 %v1354
        %v1528 = vunpack.c.l.b16 %v1355
        %v1529 = vunpack.c.h.b16 %v1355
        %v1530 = vunpack.c.l.b16 %v1356
        %v1531 = vunpack.c.h.b16 %v1356
        %v1532 = vunpack.c.l.b16 %v1357
        %v1533 = vunpack.c.h.b16 %v1357
        %v1534 = vunpack.c.l.b16 %v1358
        %v1535 = vunpack.c.h.b16 %v1358
        %v1536 = vpack.c.b16 %v1474, %v1472
        %v1537 = vpack.c.b16 %v1475, %v1473
        %v1538 = vpack.c.b16 %v1478, %v1476
        %v1539 = vpack.c.b16 %v1479, %v1477
        %v1540 = vpack.c.b16 %v1482, %v1480
        %v1541 = vpack.c.b16 %v1483, %v1481
        %v1542 = vpack.c.b16 %v1486, %v1484
        %v1543 = vpack.c.b16 %v1487, %v1485
        %v1544 = vpack.c.b16 %v1490, %v1488
        %v1545 = vpack.c.b16 %v1491, %v1489
        %v1546 = vpack.c.b16 %v1494, %v1492
        %v1547 = vpack.c.b16 %v1495, %v1493
        %v1548 = vpack.c.b16 %v1498, %v1496
        %v1549 = vpack.c.b16 %v1499, %v1497
        %v1550 = vpack.c.b16 %v1502, %v1500
        %v1551 = vpack.c.b16 %v1503, %v1501
        %v1552 = vpack.c.b16 %v1506, %v1504
        %v1553 = vpack.c.b16 %v1507, %v1505
        %v1554 = vpack.c.b16 %v1510, %v1508
        %v1555 = vpack.c.b16 %v1511, %v1509
        %v1556 = vpack.c.b16 %v1514, %v1512
        %v1557 = vpack.c.b16 %v1515, %v1513
        %v1558 = vpack.c.b16 %v1518, %v1516
        %v1559 = vpack.c.b16 %v1519, %v1517
        %v1560 = vpack.c.b16 %v1522, %v1520
        %v1561 = vpack.c.b16 %v1523, %v1521
        %v1562 = vpack.c.b16 %v1526, %v1524
        %v1563 = vpack.c.b16 %v1527, %v1525
        %v1564 = vpack.c.b16 %v1530, %v1528
        %v1565 = vpack.c.b16 %v1531, %v1529
        %v1566 = vpack.c.b16 %v1534, %v1532
        %v1567 = vpack.c.b16 %v1535, %v1533
        %v1664 = vunpack.c.l.b16 %v1359
        %v1665 = vunpack.c.h.b16 %v1359
        %v1666 = vunpack.c.l.b16 %v1360
        %v1667 = vunpack.c.l.b16 %v1361
        %v1668 = vunpack.c.h.b16 %v1361
        %v1669 = vunpack.c.l.b16 %v1362
        %v1670 = vunpack.c.l.b16 %v1363
        %v1671 = vunpack.c.h.b16 %v1363
        %v1672 = vunpack.c.l.b16 %v1364
        %v1673 = vunpack.c.l.b16 %v1365
        %v1674 = vunpack.c.h.b16 %v1365
        %v1675 = vunpack.c.l.b16 %v1366
        %v1676 = vunpack.c.l.b16 %v1367
        %v1677 = vunpack.c.h.b16 %v1367
        %v1678 = vunpack.c.l.b16 %v1368
        %v1679 = vunpack.c.l.b16 %v1369
        %v1680 = vunpack.c.h.b16 %v1369
        %v1681 = vunpack.c.l.b16 %v1370
        %v1682 = vunpack.c.l.b16 %v1371
        %v1683 = vunpack.c.h.b16 %v1371
        %v1684 = vunpack.c.l.b16 %v1372
        %v1685 = vunpack.c.l.b16 %v1373
        %v1686 = vunpack.c.h.b16 %v1373
        %v1687 = vunpack.c.l.b16 %v1374
        %v1688 = vunpack.c.l.b16 %v1375
        %v1689 = vunpack.c.h.b16 %v1375
        %v1690 = vunpack.c.l.b16 %v1376
        %v1691 = vunpack.c.l.b16 %v1377
        %v1692 = vunpack.c.h.b16 %v1377
        %v1693 = vunpack.c.l.b16 %v1378
        %v1694 = vunpack.c.l.b16 %v1379
        %v1695 = vunpack.c.h.b16 %v1379
        %v1696 = vunpack.c.l.b16 %v1380
        %v1697 = vunpack.c.l.b16 %v1381
        %v1698 = vunpack.c.h.b16 %v1381
        %v1699 = vunpack.c.l.b16 %v1382
        %v1700 = vunpack.c.l.b16 %v1383
        %v1701 = vunpack.c.h.b16 %v1383
        %v1702 = vunpack.c.l.b16 %v1384
        %v1703 = vunpack.c.l.b16 %v1385
        %v1704 = vunpack.c.h.b16 %v1385
        %v1705 = vunpack.c.l.b16 %v1386
        %v1706 = vunpack.c.l.b16 %v1387
        %v1707 = vunpack.c.h.b16 %v1387
        %v1708 = vunpack.c.l.b16 %v1388
        %v1709 = vunpack.c.l.b16 %v1389
        %v1710 = vunpack.c.h.b16 %v1389
        %v1711 = vunpack.c.l.b16 %v1390
        %v1712 = vunpack.c.l.b16 %v1391
        %v1713 = vunpack.c.h.b16 %v1391
        %v1714 = vunpack.c.l.b16 %v1392
        %v1715 = vunpack.c.l.b16 %v1393
        %v1716 = vunpack.c.h.b16 %v1393
        %v1717 = vunpack.c.l.b16 %v1394
        %v1718 = vunpack.c.l.b16 %v1395
        %v1719 = vunpack.c.h.b16 %v1395
        %v1720 = vunpack.c.l.b16 %v1396
        %v1721 = vunpack.c.l.b16 %v1397
        %v1722 = vunpack.c.h.b16 %v1397
        %v1723 = vunpack.c.l.b16 %v1398
        %v1724 = vunpack.c.l.b16 %v1399
        %v1725 = vunpack.c.h.b16 %v1399
        %v1726 = vunpack.c.l.b16 %v1400
        %v1727 = vunpack.c.l.b16 %v1401
        %v1728 = vunpack.c.h.b16 %v1401
        %v1729 = vunpack.c.l.b16 %v1402
        %v1730 = vunpack.c.l.b16 %v1403
        %v1731 = vunpack.c.h.b16 %v1403
        %v1732 = vunpack.c.l.b16 %v1404
        %v1733 = vunpack.c.l.b16 %v1405
        %v1734 = vunpack.c.h.b16 %v1405
        %v1735 = vunpack.c.l.b16 %v1406
        %v1736 = vunpack.c.l.b16 %v1407
        %v1737 = vunpack.c.h.b16 %v1407
        %v1738 = vunpack.c.l.b16 %v1408
        %v1739 = vunpack.c.l.b16 %v1409
        %v1740 = vunpack.c.h.b16 %v1409
        %v1741 = vunpack.c.l.b16 %v1410
        %v1742 = vunpack.c.l.b16 %v1411
        %v1743 = vunpack.c.h.b16 %v1411
        %v1744 = vunpack.c.l.b16 %v1412
        %v1745 = vunpack.c.l.b16 %v1413
        %v1746 = vunpack.c.h.b16 %v1413
        %v1747 = vunpack.c.l.b16 %v1414
        %v1748 = vunpack.c.l.b16 %v1415
        %v1749 = vunpack.c.h.b16 %v1415
        %v1750 = vunpack.c.l.b16 %v1416
        %v1751 = vunpack.c.l.b16 %v1417
        %v1752 = vunpack.c.h.b16 %v1417
        %v1753 = vunpack.c.l.b16 %v1418
        %v1754 = vunpack.c.l.b16 %v1419
        %v1755 = vunpack.c.h.b16 %v1419
        %v1756 = vunpack.c.l.b16 %v1420
        %v1757 = vunpack.c.l.b16 %v1421
        %v1758 = vunpack.c.h.b16 %v1421
        %v1759 = vunpack.c.l.b16 %v1422
        %v1760 = vpack.c.b16 %v1667, %v1664
        %v1761 = vpack.c.b16 %v1668, %v1665
        %v1762 = vpack.c.b16 %v1669, %v1666
        %v1763 = vpack.c.b16 %v1673, %v1670
        %v1764 = vpack.c.b16 %v1674, %v1671
        %v1765 = vpack.c.b16 %v1675, %v1672
        %v1766 = vpack.c.b16 %v1679, %v1676
        %v1767 = vpack.c.b16 %v1680, %v1677
        %v1768 = vpack.c.b16 %v1681, %v1678
        %v1769 = vpack.c.b16 %v1685, %v1682
        %v1770 = vpack.c.b16 %v1686, %v1683
        %v1771 = vpack.c.b16 %v1687, %v1684
        %v1772 = vpack.c.b16 %v1691, %v1688
        %v1773 = vpack.c.b16 %v1692, %v1689
        %v1774 = vpack.c.b16 %v1693, %v1690
        %v1775 = vpack.c.b16 %v1697, %v1694
        %v1776 = vpack.c.b16 %v1698, %v1695
        %v1777 = vpack.c.b16 %v1699, %v1696
        %v1778 = vpack.c.b16 %v1703, %v1700
        %v1779 = vpack.c.b16 %v1704, %v1701
        %v1780 = vpack.c.b16 %v1705, %v1702
        %v1781 = vpack.c.b16 %v1709, %v1706
        %v1782 = vpack.c.b16 %v1710, %v1707
        %v1783 = vpack.c.b16 %v1711, %v1708
        %v1784 = vpack.c.b16 %v1715, %v1712
        %v1785 = vpack.c.b16 %v1716, %v1713
        %v1786 = vpack.c.b16 %v1717, %v1714
        %v1787 = vpack.c.b16 %v1721, %v1718
        %v1788 = vpack.c.b16 %v1722, %v1719
        %v1789 = vpack.c.b16 %v1723, %v1720
        %v1790 = vpack.c.b16 %v1727, %v1724
        %v1791 = vpack.c.b16 %v1728, %v1725
        %v1792 = vpack.c.b16 %v1729, %v1726
        %v1793 = vpack.c.b16 %v1733, %v1730
        %v1794 = vpack.c.b16 %v1734, %v1731
        %v1795 = vpack.c.b16 %v1735, %v1732
        %v1796 = vpack.c.b16 %v1739, %v1736
        %v1797 = vpack.c.b16 %v1740, %v1737
        %v1798 = vpack.c.b16 %v1741, %v1738
        %v1799 = vpack.c.b16 %v1745, %v1742
        %v1800 = vpack.c.b16 %v1746, %v1743
        %v1801 = vpack.c.b16 %v1747, %v1744
        %v1802 = vpack.c.b16 %v1751, %v1748
        %v1803 = vpack.c.b16 %v1752, %v1749
        %v1804 = vpack.c.b16 %v1753, %v1750
        %v1805 = vpack.c.b16 %v1757, %v1754
        %v1806 = vpack.c.b16 %v1758, %v1755
        %v1807 = vpack.c.b16 %v1759, %v1756
        %1856 = vmatprep.subr.bf16.mxu0 %v1782
        %1857 = vmatpush1.bf16.msra.mxu0 %v1781
        %1858 = vmatprep.subr.bf16.mxu0 %v1779
        %1859 = vmatpush1.bf16.msra.mxu0 %v1778
        %1860 = vmatprep.subr.bf16.mxu0 %v1776
        %1861 = vmatpush1.bf16.msra.mxu0 %v1775
        %1862 = vmatprep.subr.bf16.mxu0 %v1773
        %1863 = vmatpush1.bf16.msra.mxu0 %v1772
        %1864 = vmatprep.subr.bf16.mxu0 %v1770
        %1865 = vmatpush1.bf16.msra.mxu0 %v1769
        %1866 = vmatprep.subr.bf16.mxu0 %v1767
        %1867 = vmatpush1.bf16.msra.mxu0 %v1766
        %1868 = vmatprep.subr.bf16.mxu0 %v1764
        %1869 = vmatpush1.bf16.msra.mxu0 %v1763
        %1870 = vmatprep.subr.bf16.mxu0 %v1761
        %1871 = vmatpush1.bf16.msra.mxu0 %v1760
        %1872 = vmatprep.subr.bf16.mxu0 %v1806
        %1873 = vmatpush2.bf16.msra.mxu0 %v1805
        %1874 = vmatprep.subr.bf16.mxu0 %v1803
        %1875 = vmatpush2.bf16.msra.mxu0 %v1802
        %1876 = vmatprep.subr.bf16.mxu0 %v1800
        %1877 = vmatpush2.bf16.msra.mxu0 %v1799
        %1878 = vmatprep.subr.bf16.mxu0 %v1797
        %1879 = vmatpush2.bf16.msra.mxu0 %v1796
        %1880 = vmatprep.subr.bf16.mxu0 %v1794
        %1881 = vmatpush2.bf16.msra.mxu0 %v1793
        %1882 = vmatprep.subr.bf16.mxu0 %v1791
        %1883 = vmatpush2.bf16.msra.mxu0 %v1790
        %1884 = vmatprep.subr.bf16.mxu0 %v1788
        %1885 = vmatpush2.bf16.msra.mxu0 %v1787
        %1886 = vmatprep.subr.bf16.mxu0 %v1785
        %1887 = vmatpush2.bf16.msra.mxu0 %v1784
        %1888 = vmatprep.mubr.bf16.mxu0 %v1537
        %1889 = vmatmul.mubr.bf16.gmra.mxu0 %v1536
        %v1890 = vpop.f32.mrf.mxu0
        %v1891 = vadd.f32 %v1428, %v1890
        %v1892 = vpop.f32.mrf.mxu0
        %v1893 = vadd.f32 %v1432, %v1892
        %v1894 = vpop.f32.mrf.mxu0
        %v1895 = vadd.f32 %v1428, %v1894
        %v1896 = vpop.f32.mrf.mxu0
        %v1897 = vadd.f32 %v1432, %v1896
        %1898 = vmatprep.mubr.bf16.mxu0 %v1539
        %1899 = vmatmul.mubr.bf16.gmra.mxu0 %v1538
        %v1900 = vpop.f32.mrf.mxu0
        %v1901 = vadd.f32 %v1428, %v1900
        %v1902 = vpop.f32.mrf.mxu0
        %v1903 = vadd.f32 %v1432, %v1902
        %v1904 = vpop.f32.mrf.mxu0
        %v1905 = vadd.f32 %v1428, %v1904
        %v1906 = vpop.f32.mrf.mxu0
        %v1907 = vadd.f32 %v1432, %v1906
        %1908 = vmatprep.mubr.bf16.mxu0 %v1541
        %1909 = vmatmul.mubr.bf16.gmra.mxu0 %v1540
        %v1910 = vpop.f32.mrf.mxu0
        %v1911 = vadd.f32 %v1428, %v1910
        %v1912 = vpop.f32.mrf.mxu0
        %v1913 = vadd.f32 %v1432, %v1912
        %v1914 = vpop.f32.mrf.mxu0
        %v1915 = vadd.f32 %v1428, %v1914
        %v1916 = vpop.f32.mrf.mxu0
        %v1917 = vadd.f32 %v1432, %v1916
        %1918 = vmatprep.mubr.bf16.mxu0 %v1543
        %1919 = vmatmul.mubr.bf16.gmra.mxu0 %v1542
        %v1920 = vpop.f32.mrf.mxu0
        %v1921 = vadd.f32 %v1428, %v1920
        %v1922 = vpop.f32.mrf.mxu0
        %v1923 = vadd.f32 %v1432, %v1922
        %v1924 = vpop.f32.mrf.mxu0
        %v1925 = vadd.f32 %v1428, %v1924
        %v1926 = vpop.f32.mrf.mxu0
        %v1927 = vadd.f32 %v1432, %v1926
        %1928 = vmatprep.mubr.bf16.mxu0 %v1545
        %1929 = vmatmul.mubr.bf16.gmra.mxu0 %v1544
        %v1930 = vpop.f32.mrf.mxu0
        %v1931 = vadd.f32 %v1428, %v1930
        %v1932 = vpop.f32.mrf.mxu0
        %v1933 = vadd.f32 %v1432, %v1932
        %v1934 = vpop.f32.mrf.mxu0
        %v1935 = vadd.f32 %v1428, %v1934
        %v1936 = vpop.f32.mrf.mxu0
        %v1937 = vadd.f32 %v1432, %v1936
        %1938 = vmatprep.mubr.bf16.mxu0 %v1547
        %1939 = vmatmul.mubr.bf16.gmra.mxu0 %v1546
        %v1940 = vpop.f32.mrf.mxu0
        %v1941 = vadd.f32 %v1428, %v1940
        %v1942 = vpop.f32.mrf.mxu0
        %v1943 = vadd.f32 %v1432, %v1942
        %v1944 = vpop.f32.mrf.mxu0
        %v1945 = vadd.f32 %v1428, %v1944
        %v1946 = vpop.f32.mrf.mxu0
        %v1947 = vadd.f32 %v1432, %v1946
        %1948 = vmatprep.mubr.bf16.mxu0 %v1549
        %1949 = vmatmul.mubr.bf16.gmra.mxu0 %v1548
        %v1950 = vpop.f32.mrf.mxu0
        %v1951 = vadd.f32 %v1428, %v1950
        %v1952 = vpop.f32.mrf.mxu0
        %v1953 = vadd.f32 %v1432, %v1952
        %v1954 = vpop.f32.mrf.mxu0
        %v1955 = vadd.f32 %v1428, %v1954
        %v1956 = vpop.f32.mrf.mxu0
        %v1957 = vadd.f32 %v1432, %v1956
        %1958 = vmatprep.mubr.bf16.mxu0 %v1551
        %1959 = vmatmul.mubr.bf16.gmra.mxu0 %v1550
        %v1960 = vpop.f32.mrf.mxu0
        %v1961 = vadd.f32 %v1428, %v1960
        %v1962 = vpop.f32.mrf.mxu0
        %v1963 = vadd.f32 %v1432, %v1962
        %v1964 = vpop.f32.mrf.mxu0
        %v1965 = vadd.f32 %v1428, %v1964
        %v1966 = vpop.f32.mrf.mxu0
        %v1967 = vadd.f32 %v1432, %v1966
        %1968 = vmatprep.mubr.bf16.mxu0 %v1553
        %1969 = vmatmul.mubr.bf16.gmra.mxu0 %v1552
        %v1970 = vpop.f32.mrf.mxu0
        %v1971 = vadd.f32 %v1428, %v1970
        %v1972 = vpop.f32.mrf.mxu0
        %v1973 = vadd.f32 %v1432, %v1972
        %v1974 = vpop.f32.mrf.mxu0
        %v1975 = vadd.f32 %v1428, %v1974
        %v1976 = vpop.f32.mrf.mxu0
        %v1977 = vadd.f32 %v1432, %v1976
        %1978 = vmatprep.mubr.bf16.mxu0 %v1555
        %1979 = vmatmul.mubr.bf16.gmra.mxu0 %v1554
        %v1980 = vpop.f32.mrf.mxu0
        %v1981 = vadd.f32 %v1428, %v1980
        %v1982 = vpop.f32.mrf.mxu0
        %v1983 = vadd.f32 %v1432, %v1982
        %v1984 = vpop.f32.mrf.mxu0
        %v1985 = vadd.f32 %v1428, %v1984
        %v1986 = vpop.f32.mrf.mxu0
        %v1987 = vadd.f32 %v1432, %v1986
        %1988 = vmatprep.mubr.bf16.mxu0 %v1557
        %1989 = vmatmul.mubr.bf16.gmra.mxu0 %v1556
        %v1990 = vpop.f32.mrf.mxu0
        %v1991 = vadd.f32 %v1428, %v1990
        %v1992 = vpop.f32.mrf.mxu0
        %v1993 = vadd.f32 %v1432, %v1992
        %v1994 = vpop.f32.mrf.mxu0
        %v1995 = vadd.f32 %v1428, %v1994
        %v1996 = vpop.f32.mrf.mxu0
        %v1997 = vadd.f32 %v1432, %v1996
        %1998 = vmatprep.mubr.bf16.mxu0 %v1559
        %1999 = vmatmul.mubr.bf16.gmra.mxu0 %v1558
        %v2000 = vpop.f32.mrf.mxu0
        %v2001 = vadd.f32 %v1428, %v2000
        %v2002 = vpop.f32.mrf.mxu0
        %v2003 = vadd.f32 %v1432, %v2002
        %v2004 = vpop.f32.mrf.mxu0
        %v2005 = vadd.f32 %v1428, %v2004
        %v2006 = vpop.f32.mrf.mxu0
        %v2007 = vadd.f32 %v1432, %v2006
        %2008 = vmatprep.mubr.bf16.mxu0 %v1561
        %2009 = vmatmul.mubr.bf16.gmra.mxu0 %v1560
        %v2010 = vpop.f32.mrf.mxu0
        %v2011 = vadd.f32 %v1428, %v2010
        %v2012 = vpop.f32.mrf.mxu0
        %v2013 = vadd.f32 %v1432, %v2012
        %v2014 = vpop.f32.mrf.mxu0
        %v2015 = vadd.f32 %v1428, %v2014
        %v2016 = vpop.f32.mrf.mxu0
        %v2017 = vadd.f32 %v1432, %v2016
        %2018 = vmatprep.mubr.bf16.mxu0 %v1563
        %2019 = vmatmul.mubr.bf16.gmra.mxu0 %v1562
        %v2020 = vpop.f32.mrf.mxu0
        %v2021 = vadd.f32 %v1428, %v2020
        %v2022 = vpop.f32.mrf.mxu0
        %v2023 = vadd.f32 %v1432, %v2022
        %v2024 = vpop.f32.mrf.mxu0
        %v2025 = vadd.f32 %v1428, %v2024
        %v2026 = vpop.f32.mrf.mxu0
        %v2027 = vadd.f32 %v1432, %v2026
        %2028 = vmatprep.mubr.bf16.mxu0 %v1565
        %2029 = vmatmul.mubr.bf16.gmra.mxu0 %v1564
        %v2030 = vpop.f32.mrf.mxu0
        %v2031 = vadd.f32 %v1428, %v2030
        %v2032 = vpop.f32.mrf.mxu0
        %v2033 = vadd.f32 %v1432, %v2032
        %v2034 = vpop.f32.mrf.mxu0
        %v2035 = vadd.f32 %v1428, %v2034
        %v2036 = vpop.f32.mrf.mxu0
        %v2037 = vadd.f32 %v1432, %v2036
        %2038 = vmatprep.mubr.bf16.mxu0 %v1567
        %2039 = vmatmul.mubr.bf16.gmra.mxu0 %v1566
        %v2040 = vpop.f32.mrf.mxu0
        %v2041 = vadd.f32 %v1428, %v2040
        %v2042 = vpop.f32.mrf.mxu0
        %v2043 = vadd.f32 %v1432, %v2042
        %v2044 = vpop.f32.mrf.mxu0
        %v2045 = vadd.f32 %v1428, %v2044
        %v2046 = vpop.f32.mrf.mxu0
        %v2047 = vadd.f32 %v1432, %v2046
        %2048 = vdwg.mxu0
        %2049 = vmatprep.subr.bf16.mxu0 0
        %2050 = vmatpush1.bf16.msra.mxu0 %v1783
        %2051 = vmatprep.subr.bf16.mxu0 0
        %2052 = vmatpush1.bf16.msra.mxu0 %v1780
        %2053 = vmatprep.subr.bf16.mxu0 0
        %2054 = vmatpush1.bf16.msra.mxu0 %v1777
        %2055 = vmatprep.subr.bf16.mxu0 0
        %2056 = vmatpush1.bf16.msra.mxu0 %v1774
        %2057 = vmatprep.subr.bf16.mxu0 0
        %2058 = vmatpush1.bf16.msra.mxu0 %v1771
        %2059 = vmatprep.subr.bf16.mxu0 0
        %2060 = vmatpush1.bf16.msra.mxu0 %v1768
        %2061 = vmatprep.subr.bf16.mxu0 0
        %2062 = vmatpush1.bf16.msra.mxu0 %v1765
        %2063 = vmatprep.subr.bf16.mxu0 0
        %2064 = vmatpush1.bf16.msra.mxu0 %v1762
        %2065 = vmatprep.subr.bf16.mxu0 0
        %2066 = vmatpush2.bf16.msra.mxu0 %v1807
        %2067 = vmatprep.subr.bf16.mxu0 0
        %2068 = vmatpush2.bf16.msra.mxu0 %v1804
        %2069 = vmatprep.subr.bf16.mxu0 0
        %2070 = vmatpush2.bf16.msra.mxu0 %v1801
        %2071 = vmatprep.subr.bf16.mxu0 0
        %2072 = vmatpush2.bf16.msra.mxu0 %v1798
        %2073 = vmatprep.subr.bf16.mxu0 0
        %2074 = vmatpush2.bf16.msra.mxu0 %v1795
        %2075 = vmatprep.subr.bf16.mxu0 0
        %2076 = vmatpush2.bf16.msra.mxu0 %v1792
        %2077 = vmatprep.subr.bf16.mxu0 0
        %2078 = vmatpush2.bf16.msra.mxu0 %v1789
        %2079 = vmatprep.subr.bf16.mxu0 0
        %2080 = vmatpush2.bf16.msra.mxu0 %v1786
        %2081 = vmatprep.mubr.bf16.mxu0 %v1537
        %2082 = vmatmul.mubr.bf16.gmra.mxu0 %v1536
        %v2083 = vpop.f32.mrf.mxu0
        %v2084 = vadd.f32 %v1436, %v2083
        %v2085 = vpop.f32.mrf.mxu0
        %v2086 = vpop.f32.mrf.mxu0
        %v2087 = vadd.f32 %v1436, %v2086
        %v2088 = vpop.f32.mrf.mxu0
        %2089 = vmatprep.mubr.bf16.mxu0 %v1539
        %2090 = vmatmul.mubr.bf16.gmra.mxu0 %v1538
        %v2091 = vpop.f32.mrf.mxu0
        %v2092 = vadd.f32 %v1436, %v2091
        %v2093 = vpop.f32.mrf.mxu0
        %v2094 = vpop.f32.mrf.mxu0
        %v2095 = vadd.f32 %v1436, %v2094
        %v2096 = vpop.f32.mrf.mxu0
        %2097 = vmatprep.mubr.bf16.mxu0 %v1541
        %2098 = vmatmul.mubr.bf16.gmra.mxu0 %v1540
        %v2099 = vpop.f32.mrf.mxu0
        %v2100 = vadd.f32 %v1436, %v2099
        %v2101 = vpop.f32.mrf.mxu0
        %v2102 = vpop.f32.mrf.mxu0
        %v2103 = vadd.f32 %v1436, %v2102
        %v2104 = vpop.f32.mrf.mxu0
        %2105 = vmatprep.mubr.bf16.mxu0 %v1543
        %2106 = vmatmul.mubr.bf16.gmra.mxu0 %v1542
        %v2107 = vpop.f32.mrf.mxu0
        %v2108 = vadd.f32 %v1436, %v2107
        %v2109 = vpop.f32.mrf.mxu0
        %v2110 = vpop.f32.mrf.mxu0
        %v2111 = vadd.f32 %v1436, %v2110
        %v2112 = vpop.f32.mrf.mxu0
        %2113 = vmatprep.mubr.bf16.mxu0 %v1545
        %2114 = vmatmul.mubr.bf16.gmra.mxu0 %v1544
        %v2115 = vpop.f32.mrf.mxu0
        %v2116 = vadd.f32 %v1436, %v2115
        %v2117 = vpop.f32.mrf.mxu0
        %v2118 = vpop.f32.mrf.mxu0
        %v2119 = vadd.f32 %v1436, %v2118
        %v2120 = vpop.f32.mrf.mxu0
        %2121 = vmatprep.mubr.bf16.mxu0 %v1547
        %2122 = vmatmul.mubr.bf16.gmra.mxu0 %v1546
        %v2123 = vpop.f32.mrf.mxu0
        %v2124 = vadd.f32 %v1436, %v2123
        %v2125 = vpop.f32.mrf.mxu0
        %v2126 = vpop.f32.mrf.mxu0
        %v2127 = vadd.f32 %v1436, %v2126
        %v2128 = vpop.f32.mrf.mxu0
        %2129 = vmatprep.mubr.bf16.mxu0 %v1549
        %2130 = vmatmul.mubr.bf16.gmra.mxu0 %v1548
        %v2131 = vpop.f32.mrf.mxu0
        %v2132 = vadd.f32 %v1436, %v2131
        %v2133 = vpop.f32.mrf.mxu0
        %v2134 = vpop.f32.mrf.mxu0
        %v2135 = vadd.f32 %v1436, %v2134
        %v2136 = vpop.f32.mrf.mxu0
        %2137 = vmatprep.mubr.bf16.mxu0 %v1551
        %2138 = vmatmul.mubr.bf16.gmra.mxu0 %v1550
        %v2139 = vpop.f32.mrf.mxu0
        %v2140 = vadd.f32 %v1436, %v2139
        %v2141 = vpop.f32.mrf.mxu0
        %v2142 = vpop.f32.mrf.mxu0
        %v2143 = vadd.f32 %v1436, %v2142
        %v2144 = vpop.f32.mrf.mxu0
        %2145 = vmatprep.mubr.bf16.mxu0 %v1553
        %2146 = vmatmul.mubr.bf16.gmra.mxu0 %v1552
        %v2147 = vpop.f32.mrf.mxu0
        %v2148 = vadd.f32 %v1436, %v2147
        %v2149 = vpop.f32.mrf.mxu0
        %v2150 = vpop.f32.mrf.mxu0
        %v2151 = vadd.f32 %v1436, %v2150
        %v2152 = vpop.f32.mrf.mxu0
        %2153 = vmatprep.mubr.bf16.mxu0 %v1555
        %2154 = vmatmul.mubr.bf16.gmra.mxu0 %v1554
        %v2155 = vpop.f32.mrf.mxu0
        %v2156 = vadd.f32 %v1436, %v2155
        %v2157 = vpop.f32.mrf.mxu0
        %v2158 = vpop.f32.mrf.mxu0
        %v2159 = vadd.f32 %v1436, %v2158
        %v2160 = vpop.f32.mrf.mxu0
        %2161 = vmatprep.mubr.bf16.mxu0 %v1557
        %2162 = vmatmul.mubr.bf16.gmra.mxu0 %v1556
        %v2163 = vpop.f32.mrf.mxu0
        %v2164 = vadd.f32 %v1436, %v2163
        %v2165 = vpop.f32.mrf.mxu0
        %v2166 = vpop.f32.mrf.mxu0
        %v2167 = vadd.f32 %v1436, %v2166
        %v2168 = vpop.f32.mrf.mxu0
        %2169 = vmatprep.mubr.bf16.mxu0 %v1559
        %2170 = vmatmul.mubr.bf16.gmra.mxu0 %v1558
        %v2171 = vpop.f32.mrf.mxu0
        %v2172 = vadd.f32 %v1436, %v2171
        %v2173 = vpop.f32.mrf.mxu0
        %v2174 = vpop.f32.mrf.mxu0
        %v2175 = vadd.f32 %v1436, %v2174
        %v2176 = vpop.f32.mrf.mxu0
        %2177 = vmatprep.mubr.bf16.mxu0 %v1561
        %2178 = vmatmul.mubr.bf16.gmra.mxu0 %v1560
        %v2179 = vpop.f32.mrf.mxu0
        %v2180 = vadd.f32 %v1436, %v2179
        %v2181 = vpop.f32.mrf.mxu0
        %v2182 = vpop.f32.mrf.mxu0
        %v2183 = vadd.f32 %v1436, %v2182
        %v2184 = vpop.f32.mrf.mxu0
        %2185 = vmatprep.mubr.bf16.mxu0 %v1563
        %2186 = vmatmul.mubr.bf16.gmra.mxu0 %v1562
        %v2187 = vpop.f32.mrf.mxu0
        %v2188 = vadd.f32 %v1436, %v2187
        %v2189 = vpop.f32.mrf.mxu0
        %v2190 = vpop.f32.mrf.mxu0
        %v2191 = vadd.f32 %v1436, %v2190
        %v2192 = vpop.f32.mrf.mxu0
        %2193 = vmatprep.mubr.bf16.mxu0 %v1565
        %2194 = vmatmul.mubr.bf16.gmra.mxu0 %v1564
        %v2195 = vpop.f32.mrf.mxu0
        %v2196 = vadd.f32 %v1436, %v2195
        %v2197 = vpop.f32.mrf.mxu0
        %v2198 = vpop.f32.mrf.mxu0
        %v2199 = vadd.f32 %v1436, %v2198
        %v2200 = vpop.f32.mrf.mxu0
        %2201 = vmatprep.mubr.bf16.mxu0 %v1567
        %2202 = vmatmul.mubr.bf16.gmra.mxu0 %v1566
        %v2203 = vpop.f32.mrf.mxu0
        %v2204 = vadd.f32 %v1436, %v2203
        %v2205 = vpop.f32.mrf.mxu0
        %v2206 = vpop.f32.mrf.mxu0
        %v2207 = vadd.f32 %v1436, %v2206
        %v2208 = vpop.f32.mrf.mxu0
        %2209 = vdwg.mxu0
        %v2210 = vpack.c.bf16 %v1895, %v1891
        %v2211 = vpack.c.bf16 %v1897, %v1893
        %v2212 = vpack.c.bf16 %v2087, %v2084
        %v2213 = vpack.c.bf16 %v1905, %v1901
        %v2214 = vpack.c.bf16 %v1907, %v1903
        %v2215 = vpack.c.bf16 %v2095, %v2092
        %v2216 = vpack.c.bf16 %v1915, %v1911
        %v2217 = vpack.c.bf16 %v1917, %v1913
        %v2218 = vpack.c.bf16 %v2103, %v2100
        %v2219 = vpack.c.bf16 %v1925, %v1921
        %v2220 = vpack.c.bf16 %v1927, %v1923
        %v2221 = vpack.c.bf16 %v2111, %v2108
        %v2222 = vpack.c.bf16 %v1935, %v1931
        %v2223 = vpack.c.bf16 %v1937, %v1933
        %v2224 = vpack.c.bf16 %v2119, %v2116
        %v2225 = vpack.c.bf16 %v1945, %v1941
        %v2226 = vpack.c.bf16 %v1947, %v1943
        %v2227 = vpack.c.bf16 %v2127, %v2124
        %v2228 = vpack.c.bf16 %v1955, %v1951
        %v2229 = vpack.c.bf16 %v1957, %v1953
        %v2230 = vpack.c.bf16 %v2135, %v2132
        %v2231 = vpack.c.bf16 %v1965, %v1961
        %v2232 = vpack.c.bf16 %v1967, %v1963
        %v2233 = vpack.c.bf16 %v2143, %v2140
        %v2234 = vpack.c.bf16 %v1975, %v1971
        %v2235 = vpack.c.bf16 %v1977, %v1973
        %v2236 = vpack.c.bf16 %v2151, %v2148
        %v2237 = vpack.c.bf16 %v1985, %v1981
        %v2238 = vpack.c.bf16 %v1987, %v1983
        %v2239 = vpack.c.bf16 %v2159, %v2156
        %v2240 = vpack.c.bf16 %v1995, %v1991
        %v2241 = vpack.c.bf16 %v1997, %v1993
        %v2242 = vpack.c.bf16 %v2167, %v2164
        %v2243 = vpack.c.bf16 %v2005, %v2001
        %v2244 = vpack.c.bf16 %v2007, %v2003
        %v2245 = vpack.c.bf16 %v2175, %v2172
        %v2246 = vpack.c.bf16 %v2015, %v2011
        %v2247 = vpack.c.bf16 %v2017, %v2013
        %v2248 = vpack.c.bf16 %v2183, %v2180
        %v2249 = vpack.c.bf16 %v2025, %v2021
        %v2250 = vpack.c.bf16 %v2027, %v2023
        %v2251 = vpack.c.bf16 %v2191, %v2188
        %v2252 = vpack.c.bf16 %v2035, %v2031
        %v2253 = vpack.c.bf16 %v2037, %v2033
        %v2254 = vpack.c.bf16 %v2199, %v2196
        %v2255 = vpack.c.bf16 %v2045, %v2041
        %v2256 = vpack.c.bf16 %v2047, %v2043
        %v2257 = vpack.c.bf16 %v2207, %v2204
        %v2306 = vunpack.c.l.b16 %v2210
        %v2307 = vunpack.c.l.b16 %v2211
        %v2308 = vunpack.c.l.b16 %v2212
        %v2309 = vunpack.c.h.b16 %v2210
        %v2310 = vunpack.c.h.b16 %v2211
        %v2311 = vunpack.c.h.b16 %v2212
        %v2312 = vunpack.c.l.b16 %v2213
        %v2313 = vunpack.c.l.b16 %v2214
        %v2314 = vunpack.c.l.b16 %v2215
        %v2315 = vunpack.c.h.b16 %v2213
        %v2316 = vunpack.c.h.b16 %v2214
        %v2317 = vunpack.c.h.b16 %v2215
        %v2318 = vunpack.c.l.b16 %v2216
        %v2319 = vunpack.c.l.b16 %v2217
        %v2320 = vunpack.c.l.b16 %v2218
        %v2321 = vunpack.c.h.b16 %v2216
        %v2322 = vunpack.c.h.b16 %v2217
        %v2323 = vunpack.c.h.b16 %v2218
        %v2324 = vunpack.c.l.b16 %v2219
        %v2325 = vunpack.c.l.b16 %v2220
        %v2326 = vunpack.c.l.b16 %v2221
        %v2327 = vunpack.c.h.b16 %v2219
        %v2328 = vunpack.c.h.b16 %v2220
        %v2329 = vunpack.c.h.b16 %v2221
        %v2330 = vunpack.c.l.b16 %v2222
        %v2331 = vunpack.c.l.b16 %v2223
        %v2332 = vunpack.c.l.b16 %v2224
        %v2333 = vunpack.c.h.b16 %v2222
        %v2334 = vunpack.c.h.b16 %v2223
        %v2335 = vunpack.c.h.b16 %v2224
        %v2336 = vunpack.c.l.b16 %v2225
        %v2337 = vunpack.c.l.b16 %v2226
        %v2338 = vunpack.c.l.b16 %v2227
        %v2339 = vunpack.c.h.b16 %v2225
        %v2340 = vunpack.c.h.b16 %v2226
        %v2341 = vunpack.c.h.b16 %v2227
        %v2342 = vunpack.c.l.b16 %v2228
        %v2343 = vunpack.c.l.b16 %v2229
        %v2344 = vunpack.c.l.b16 %v2230
        %v2345 = vunpack.c.h.b16 %v2228
        %v2346 = vunpack.c.h.b16 %v2229
        %v2347 = vunpack.c.h.b16 %v2230
        %v2348 = vunpack.c.l.b16 %v2231
        %v2349 = vunpack.c.l.b16 %v2232
        %v2350 = vunpack.c.l.b16 %v2233
        %v2351 = vunpack.c.h.b16 %v2231
        %v2352 = vunpack.c.h.b16 %v2232
        %v2353 = vunpack.c.h.b16 %v2233
        %v2354 = vunpack.c.l.b16 %v2234
        %v2355 = vunpack.c.l.b16 %v2235
        %v2356 = vunpack.c.l.b16 %v2236
        %v2357 = vunpack.c.h.b16 %v2234
        %v2358 = vunpack.c.h.b16 %v2235
        %v2359 = vunpack.c.h.b16 %v2236
        %v2360 = vunpack.c.l.b16 %v2237
        %v2361 = vunpack.c.l.b16 %v2238
        %v2362 = vunpack.c.l.b16 %v2239
        %v2363 = vunpack.c.h.b16 %v2237
        %v2364 = vunpack.c.h.b16 %v2238
        %v2365 = vunpack.c.h.b16 %v2239
        %v2366 = vunpack.c.l.b16 %v2240
        %v2367 = vunpack.c.l.b16 %v2241
        %v2368 = vunpack.c.l.b16 %v2242
        %v2369 = vunpack.c.h.b16 %v2240
        %v2370 = vunpack.c.h.b16 %v2241
        %v2371 = vunpack.c.h.b16 %v2242
        %v2372 = vunpack.c.l.b16 %v2243
        %v2373 = vunpack.c.l.b16 %v2244
        %v2374 = vunpack.c.l.b16 %v2245
        %v2375 = vunpack.c.h.b16 %v2243
        %v2376 = vunpack.c.h.b16 %v2244
        %v2377 = vunpack.c.h.b16 %v2245
        %v2378 = vunpack.c.l.b16 %v2246
        %v2379 = vunpack.c.l.b16 %v2247
        %v2380 = vunpack.c.l.b16 %v2248
        %v2381 = vunpack.c.h.b16 %v2246
        %v2382 = vunpack.c.h.b16 %v2247
        %v2383 = vunpack.c.h.b16 %v2248
        %v2384 = vunpack.c.l.b16 %v2249
        %v2385 = vunpack.c.l.b16 %v2250
        %v2386 = vunpack.c.l.b16 %v2251
        %v2387 = vunpack.c.h.b16 %v2249
        %v2388 = vunpack.c.h.b16 %v2250
        %v2389 = vunpack.c.h.b16 %v2251
        %v2390 = vunpack.c.l.b16 %v2252
        %v2391 = vunpack.c.l.b16 %v2253
        %v2392 = vunpack.c.l.b16 %v2254
        %v2393 = vunpack.c.h.b16 %v2252
        %v2394 = vunpack.c.h.b16 %v2253
        %v2395 = vunpack.c.h.b16 %v2254
        %v2396 = vunpack.c.l.b16 %v2255
        %v2397 = vunpack.c.l.b16 %v2256
        %v2398 = vunpack.c.l.b16 %v2257
        %v2399 = vunpack.c.h.b16 %v2255
        %v2400 = vunpack.c.h.b16 %v2256
        %v2401 = vunpack.c.h.b16 %v2257
        %v2402 = vpack.c.b16 %v2307, %v2306
        %v2403 = vpack.c.b16 %v2308, %v2308
        %v2404 = vpack.c.b16 %v2310, %v2309
        %v2405 = vpack.c.b16 %v2311, %v2311
        %v2406 = vpack.c.b16 %v2313, %v2312
        %v2407 = vpack.c.b16 %v2314, %v2314
        %v2408 = vpack.c.b16 %v2316, %v2315
        %v2409 = vpack.c.b16 %v2317, %v2317
        %v2410 = vpack.c.b16 %v2319, %v2318
        %v2411 = vpack.c.b16 %v2320, %v2320
        %v2412 = vpack.c.b16 %v2322, %v2321
        %v2413 = vpack.c.b16 %v2323, %v2323
        %v2414 = vpack.c.b16 %v2325, %v2324
        %v2415 = vpack.c.b16 %v2326, %v2326
        %v2416 = vpack.c.b16 %v2328, %v2327
        %v2417 = vpack.c.b16 %v2329, %v2329
        %v2418 = vpack.c.b16 %v2331, %v2330
        %v2419 = vpack.c.b16 %v2332, %v2332
        %v2420 = vpack.c.b16 %v2334, %v2333
        %v2421 = vpack.c.b16 %v2335, %v2335
        %v2422 = vpack.c.b16 %v2337, %v2336
        %v2423 = vpack.c.b16 %v2338, %v2338
        %v2424 = vpack.c.b16 %v2340, %v2339
        %v2425 = vpack.c.b16 %v2341, %v2341
        %v2426 = vpack.c.b16 %v2343, %v2342
        %v2427 = vpack.c.b16 %v2344, %v2344
        %v2428 = vpack.c.b16 %v2346, %v2345
        %v2429 = vpack.c.b16 %v2347, %v2347
        %v2430 = vpack.c.b16 %v2349, %v2348
        %v2431 = vpack.c.b16 %v2350, %v2350
        %v2432 = vpack.c.b16 %v2352, %v2351
        %v2433 = vpack.c.b16 %v2353, %v2353
        %v2434 = vpack.c.b16 %v2355, %v2354
        %v2435 = vpack.c.b16 %v2356, %v2356
        %v2436 = vpack.c.b16 %v2358, %v2357
        %v2437 = vpack.c.b16 %v2359, %v2359
        %v2438 = vpack.c.b16 %v2361, %v2360
        %v2439 = vpack.c.b16 %v2362, %v2362
        %v2440 = vpack.c.b16 %v2364, %v2363
        %v2441 = vpack.c.b16 %v2365, %v2365
        %v2442 = vpack.c.b16 %v2367, %v2366
        %v2443 = vpack.c.b16 %v2368, %v2368
        %v2444 = vpack.c.b16 %v2370, %v2369
        %v2445 = vpack.c.b16 %v2371, %v2371
        %v2446 = vpack.c.b16 %v2373, %v2372
        %v2447 = vpack.c.b16 %v2374, %v2374
        %v2448 = vpack.c.b16 %v2376, %v2375
        %v2449 = vpack.c.b16 %v2377, %v2377
        %v2450 = vpack.c.b16 %v2379, %v2378
        %v2451 = vpack.c.b16 %v2380, %v2380
        %v2452 = vpack.c.b16 %v2382, %v2381
        %v2453 = vpack.c.b16 %v2383, %v2383
        %v2454 = vpack.c.b16 %v2385, %v2384
        %v2455 = vpack.c.b16 %v2386, %v2386
        %v2456 = vpack.c.b16 %v2388, %v2387
        %v2457 = vpack.c.b16 %v2389, %v2389
        %v2458 = vpack.c.b16 %v2391, %v2390
        %v2459 = vpack.c.b16 %v2392, %v2392
        %v2460 = vpack.c.b16 %v2394, %v2393
        %v2461 = vpack.c.b16 %v2395, %v2395
        %v2462 = vpack.c.b16 %v2397, %v2396
        %v2463 = vpack.c.b16 %v2398, %v2398
        %v2464 = vpack.c.b16 %v2400, %v2399
        %v2465 = vpack.c.b16 %v2401, %v2401
        %2530 = vst [vmem:[%s298] sm:$0xff] %v2402
        %2531 = vst [vmem:[%s298 + $0x8] sm:$0xf] %v2403
        %2532 = vst [vmem:[%s298 + $0xc] sm:$0xff] %v2404
        %2533 = vst [vmem:[%s298 + $0x14] sm:$0xf] %v2405
        %2534 = vst [vmem:[%s298 + $0x18] sm:$0xff] %v2406
        %2535 = vst [vmem:[%s298 + $0x20] sm:$0xf] %v2407
        %2536 = vst [vmem:[%s298 + $0x24] sm:$0xff] %v2408
        %2537 = vst [vmem:[%s298 + $0x2c] sm:$0xf] %v2409
        %2538 = vst [vmem:[%s298 + $0x30] sm:$0xff] %v2410
        %2539 = vst [vmem:[%s298 + $0x38] sm:$0xf] %v2411
        %2540 = vst [vmem:[%s298 + $0x3c] sm:$0xff] %v2412
        %2541 = vst [vmem:[%s298 + $0x44] sm:$0xf] %v2413
        %2542 = vst [vmem:[%s298 + $0x48] sm:$0xff] %v2414
        %2543 = vst [vmem:[%s298 + $0x50] sm:$0xf] %v2415
        %2544 = vst [vmem:[%s298 + $0x54] sm:$0xff] %v2416
        %2545 = vst [vmem:[%s298 + $0x5c] sm:$0xf] %v2417
        %2546 = vst [vmem:[%s298 + $0x60] sm:$0xff] %v2418
        %2547 = vst [vmem:[%s298 + $0x68] sm:$0xf] %v2419
        %2548 = vst [vmem:[%s298 + $0x6c] sm:$0xff] %v2420
        %2549 = vst [vmem:[%s298 + $0x74] sm:$0xf] %v2421
        %2550 = vst [vmem:[%s298 + $0x78] sm:$0xff] %v2422
        %2551 = vst [vmem:[%s298 + $0x80] sm:$0xf] %v2423
        %2552 = vst [vmem:[%s298 + $0x84] sm:$0xff] %v2424
        %2553 = vst [vmem:[%s298 + $0x8c] sm:$0xf] %v2425
        %2554 = vst [vmem:[%s298 + $0x90] sm:$0xff] %v2426
        %2555 = vst [vmem:[%s298 + $0x98] sm:$0xf] %v2427
        %2556 = vst [vmem:[%s298 + $0x9c] sm:$0xff] %v2428
        %2557 = vst [vmem:[%s298 + $0xa4] sm:$0xf] %v2429
        %2558 = vst [vmem:[%s298 + $0xa8] sm:$0xff] %v2430
        %2559 = vst [vmem:[%s298 + $0xb0] sm:$0xf] %v2431
        %2560 = vst [vmem:[%s298 + $0xb4] sm:$0xff] %v2432
        %2561 = vst [vmem:[%s298 + $0xbc] sm:$0xf] %v2433
        %2562 = vst [vmem:[%s298 + $0xc0] sm:$0xff] %v2434
        %2563 = vst [vmem:[%s298 + $0xc8] sm:$0xf] %v2435
        %2564 = vst [vmem:[%s298 + $0xcc] sm:$0xff] %v2436
        %2565 = vst [vmem:[%s298 + $0xd4] sm:$0xf] %v2437
        %2566 = vst [vmem:[%s298 + $0xd8] sm:$0xff] %v2438
        %2567 = vst [vmem:[%s298 + $0xe0] sm:$0xf] %v2439
        %2568 = vst [vmem:[%s298 + $0xe4] sm:$0xff] %v2440
        %2569 = vst [vmem:[%s298 + $0xec] sm:$0xf] %v2441
        %2570 = vst [vmem:[%s298 + $0xf0] sm:$0xff] %v2442
        %2571 = vst [vmem:[%s298 + $0xf8] sm:$0xf] %v2443
        %2572 = vst [vmem:[%s298 + $0xfc] sm:$0xff] %v2444
        %2573 = vst [vmem:[%s298 + $0x104] sm:$0xf] %v2445
        %2574 = vst [vmem:[%s298 + $0x108] sm:$0xff] %v2446
        %2575 = vst [vmem:[%s298 + $0x110] sm:$0xf] %v2447
        %2576 = vst [vmem:[%s298 + $0x114] sm:$0xff] %v2448
        %2577 = vst [vmem:[%s298 + $0x11c] sm:$0xf] %v2449
        %2578 = vst [vmem:[%s298 + $0x120] sm:$0xff] %v2450
        %2579 = vst [vmem:[%s298 + $0x128] sm:$0xf] %v2451
        %2580 = vst [vmem:[%s298 + $0x12c] sm:$0xff] %v2452
        %2581 = vst [vmem:[%s298 + $0x134] sm:$0xf] %v2453
        %2582 = vst [vmem:[%s298 + $0x138] sm:$0xff] %v2454
        %2583 = vst [vmem:[%s298 + $0x140] sm:$0xf] %v2455
        %2584 = vst [vmem:[%s298 + $0x144] sm:$0xff] %v2456
        %2585 = vst [vmem:[%s298 + $0x14c] sm:$0xf] %v2457
        %2586 = vst [vmem:[%s298 + $0x150] sm:$0xff] %v2458
        %2587 = vst [vmem:[%s298 + $0x158] sm:$0xf] %v2459
        %2588 = vst [vmem:[%s298 + $0x15c] sm:$0xff] %v2460
        %2589 = vst [vmem:[%s298 + $0x164] sm:$0xf] %v2461
        %2590 = vst [vmem:[%s298 + $0x168] sm:$0xff] %v2462
        %2591 = vst [vmem:[%s298 + $0x170] sm:$0xf] %v2463
        %2592 = vst [vmem:[%s298 + $0x174] sm:$0xff] %v2464
        %2593 = vst [vmem:[%s298 + $0x17c] sm:$0xf] %v2465
        %s2594 = sand.u32 %s141, 1
        %s2595 = scalar_lea.sflag [#allocation5], %s2594
        %s2596 = sand.u32 %s141, 1
        %s2597 = smul.addr %s2596, 384
        %s2598 = scalar_lea.vmem [#allocation10], %s2597
        // Predicated region
        $region57: #{tpu_custom_call.1} parent=35 // pred_check
          %p2599 = pneg %p151
        $region58: #{tpu_custom_call.1} parent=35 // pred_check_branch
          %2601 = sbr.rel (%p2599) target = $region60
        $region59: #{tpu_custom_call.1} parent=35 // pred_region
          %s2602 = smul.u32 32, %s24
          %s2603 = smul.u32 3, %s25
          %s2605 = ssub.s32 6144, 6144
          %2606 = vsyncadd %s2595, %s2605
          %s2607 = smul.addr %s2602, 6
          %s2608 = sadd.s32 %s2603, %s2607
          %s2609 = smul.addr %s2608, 64
          %s2610 = scalar_lea.hbm %s4, %s2609
          %s2611 = sshll.u32 %s2598, 4
          %s2612 = int_to_ptr.vmem [resolvable:$true] %s2611
          %2617 = dma.vmem_to_hbm [thread:$0]  %s2612, 6144, %s2610, %s2595, 192, 384, 12
        $region60: #{tpu_custom_call.1} parent=35 // pred_fallthru
          _
      $region36: #{tpu_custom_call.1} parent=5 // pred_fallthru
        _
      %p2618 = scmp.le.s32.totalorder 2, %s15
      // Predicated region
      $region61: #{tpu_custom_call.1} parent=5 // pred_check
        %p2619 = pneg %p2618
      $region62: #{tpu_custom_call.1} parent=5 // pred_check_branch
        %2621 = sbr.rel (%p2619) target = $region64
      $region63: #{tpu_custom_call.1} parent=5 // pred_region
        %s2622 = ssub.s32 %s15, 2
        // Predicated region
        $region65: #{tpu_custom_call.1} parent=63 // pred_check
          %p2623 = pneg %p157
        $region66: #{tpu_custom_call.1} parent=63 // pred_check_branch
          %2625 = sbr.rel (%p2623) target = $region68
        $region67: #{tpu_custom_call.1} parent=63 // pred_region
          %s2626 = sand.u32 %s142, 1
          %s2627 = scalar_lea.sflag [#allocation5], %s2626
          %s2628 = sand.u32 %s142, 1
          %s2629 = smul.addr %s2628, 384
          %s2630 = scalar_lea.vmem [#allocation10], %s2629
          %2631 = dma.done %s2627, 6144
        $region68: #{tpu_custom_call.1} parent=63 // pred_fallthru
          _
      $region64: #{tpu_custom_call.1} parent=5 // pred_fallthru
        _
    $region6: #{tpu_custom_call.1} parent=1 // loop_footer
      %s19 = sadd.s32 1, %s15
    $region7: #{tpu_custom_call.1} parent=1 // loop_footer_branch
      %14 = sbr.rel target = $region3
    $region8: #{tpu_custom_call.1} parent=1 // loop_exit
      _
    %2632 = vsyncpa [#allocation4], 1
    %s2633 = scalar_lea.sflag [#allocation4], 1
    %2634 = vsyncpa %s2633, 1
    %2635 = vsyncpa [#allocation7], 1
    %2636 = vsyncpa [#allocation5], 1
    %s2637 = scalar_lea.sflag [#allocation5], 1
    %2638 = vsyncpa %s2637, 1

</llo_original>
